<compile_context>
chip_gen: v5e
topology: v5e:2x2
jax: 0.10.0
libtpu: 0.0.40
codegen_flags: <defaults>
</compile_context>

<pallas_src>
import jax
import jax.numpy as jnp
import numpy as np
from jax.experimental import pallas as pl
from jax.experimental.pallas import tpu as pltpu


# ----------------------------------------------------------------------------
# Constants (lane-dense padded sizes)
# ----------------------------------------------------------------------------
LANES = 128        # TPU lane width
CPAD = 128         # padded channel / logit width (10, 20, 10 -> 128)
K1PAD = 32         # conv1 im2col K: 1*5*5 = 25  -> 32
K2PAD = 256        # conv2 im2col K: 10*5*5 = 250 -> 256
H1, W1 = 24, 24    # conv1 output spatial (28-5+1)
P1 = 144           # pooled conv1 spatial (12*12)
H2, W2 = 8, 8      # conv2 output spatial (12-5+1)
P2 = 16            # pooled conv2 spatial (4*4)


def _mosaic_params(dimension_semantics):
    """Version-tolerant construction of Mosaic compiler params."""
    cls = getattr(pltpu, "CompilerParams", None) or getattr(
        pltpu, "TPUCompilerParams", None)
    if cls is not None:
        return cls(dimension_semantics=dimension_semantics)
    return dict(mosaic=dict(dimension_semantics=dimension_semantics))


# ----------------------------------------------------------------------------
# Kernel 1: conv1 (as im2col matmul) + bias + 2x2 maxpool + ReLU
#   patches rows are ordered (pool_group, oh2*12+ow2), so pooling is a max of
#   four tile-aligned 144-row blocks.
# ----------------------------------------------------------------------------
def _conv1_pool_relu_kernel(p_ref, w_ref, b_ref, o_ref):
    # p_ref: (1, 576, K1PAD)  w_ref: (K1PAD, CPAD)  b_ref: (1, CPAD)
    c = jnp.dot(p_ref[0], w_ref[...], preferred_element_type=jnp.float32)
    c = c + b_ref[...]                                   # (576, 128)
    m = jnp.maximum(jnp.maximum(c[0:144], c[144:288]),
                    jnp.maximum(c[288:432], c[432:576]))  # 2x2 max-pool
    o_ref[0] = jnp.maximum(m, 0.0)                        # ReLU, (144, 128)


def conv1_pool_relu(patches, w1p, b1p):
    B = patches.shape[0]
    return pl.pallas_call(
        _conv1_pool_relu_kernel,
        out_shape=jax.ShapeDtypeStruct((B, P1, CPAD), jnp.float32),
        grid=(B,),
        in_specs=[
            pl.BlockSpec((1, 4 * P1, K1PAD), lambda b: (b, 0, 0)),
            pl.BlockSpec((K1PAD, CPAD), lambda b: (0, 0)),   # resident weight
            pl.BlockSpec((1, CPAD), lambda b: (0, 0)),       # resident bias
        ],
        out_specs=pl.BlockSpec((1, P1, CPAD), lambda b: (b, 0, 0)),
        compiler_params=_mosaic_params(("parallel",)),
    )(patches, w1p, b1p)


# ----------------------------------------------------------------------------
# Kernel 2: conv2 (im2col matmul) + bias + 2x2 maxpool + ReLU + fc(320->10)
#   The fc is a (16,128) @ (128, 16*128) matmul against a spatially-expanded
#   weight; a precomputed block-diagonal mask plus a lane-block fold reduce it
#   to the 10 (padded to 128) logits without any awkward in-kernel reshapes.
# ----------------------------------------------------------------------------
def _conv2_pool_relu_fc_kernel(p_ref, w2_ref, b2_ref, wf_ref, mask_ref,
                               bf_ref, o_ref):
    # p_ref: (1, 64, K2PAD)   w2_ref: (K2PAD, CPAD)   b2_ref: (1, CPAD)
    # wf_ref: (CPAD, 16*CPAD) mask_ref: (16, 16*CPAD) bf_ref: (1, CPAD)
    c = jnp.dot(p_ref[0], w2_ref[...], preferred_element_type=jnp.float32)
    c = c + b2_ref[...]                                   # (64, 128)
    m = jnp.maximum(jnp.maximum(c[0:16], c[16:32]),
                    jnp.maximum(c[32:48], c[48:64]))      # 2x2 max-pool
    a2 = jnp.maximum(m, 0.0)                              # (16, 128) activations

    # Fully-connected layer: out[n] = sum_{s,c} a2[s,c] * WF[s,c,n]
    y = jnp.dot(a2, wf_ref[...], preferred_element_type=jnp.float32)  # (16, 2048)
    y = y * mask_ref[...]                 # keep only the s==lane-block terms
    r = jnp.sum(y, axis=0, keepdims=True)                 # (1, 2048)
    o = bf_ref[...]                                       # (1, 128)
    for s in range(P2):                                   # fold 16 lane blocks
        o = o + r[:, s * CPAD:(s + 1) * CPAD]
    o_ref[0] = o                                          # (1, 128)


def conv2_pool_relu_fc(patches, w2p, b2p, wfperm, fc_mask, bfp):
    B = patches.shape[0]
    return pl.pallas_call(
        _conv2_pool_relu_fc_kernel,
        out_shape=jax.ShapeDtypeStruct((B, 1, CPAD), jnp.float32),
        grid=(B,),
        in_specs=[
            pl.BlockSpec((1, 4 * P2, K2PAD), lambda b: (b, 0, 0)),
            pl.BlockSpec((K2PAD, CPAD), lambda b: (0, 0)),       # resident
            pl.BlockSpec((1, CPAD), lambda b: (0, 0)),           # resident
            pl.BlockSpec((CPAD, P2 * CPAD), lambda b: (0, 0)),   # resident
            pl.BlockSpec((P2, P2 * CPAD), lambda b: (0, 0)),     # resident
            pl.BlockSpec((1, CPAD), lambda b: (0, 0)),           # resident
        ],
        out_specs=pl.BlockSpec((1, 1, CPAD), lambda b: (b, 0, 0)),
        compiler_params=_mosaic_params(("parallel",)),
    )(patches, w2p, b2p, wfperm, fc_mask, bfp)


# ----------------------------------------------------------------------------
# Trace-time glue (runs under jit): im2col patch extraction in pool-group order
# ----------------------------------------------------------------------------
def _im2col_conv1(x):
    """x: (B, 1, 28, 28) -> (B, 576, K1PAD); rows ordered (pg, oh2*12+ow2)."""
    B = x.shape[0]
    img = x[:, 0]                                                    # (B,28,28)
    cols = [img[:, kh:kh + H1, kw:kw + W1]
            for kh in range(5) for kw in range(5)]                   # 25x(B,24,24)
    p = jnp.stack(cols, axis=-1)                                     # (B,24,24,25)
    p = p.reshape(B, 12, 2, 12, 2, 25).transpose(0, 2, 4, 1, 3, 5)   # (B,py,px,oh2,ow2,k)
    p = p.reshape(B, 4 * P1, 25)
    return jnp.pad(p, ((0, 0), (0, 0), (0, K1PAD - 25)))


def _im2col_conv2(a1):
    """a1: (B, 144, 128) NHWC-in-lanes -> (B, 64, K2PAD); pool-group rows."""
    B = a1.shape[0]
    a = a1[:, :, :10].reshape(B, 12, 12, 10)
    cols = [a[:, kh:kh + H2, kw:kw + W2, :]
            for kh in range(5) for kw in range(5)]                   # 25x(B,8,8,10)
    p = jnp.stack(cols, axis=3)                                      # (B,8,8,25,10)
    p = p.reshape(B, 4, 2, 4, 2, 25, 10).transpose(0, 2, 4, 1, 3, 5, 6)
    p = p.reshape(B, 4 * P2, 250)
    return jnp.pad(p, ((0, 0), (0, 0), (0, K2PAD - 250)))


def prepare_params(params):
    """One-time padding / permutation of the PyTorch-layout parameters."""
    w1, b1, w2, b2, wf, bf = params
    # conv1: K-order (kh,kw) since Cin=1; pad K->32, Cout 10->128.
    w1p = jnp.zeros((K1PAD, CPAD), jnp.float32).at[:25, :10].set(
        w1.reshape(10, 25).T)
    b1p = jnp.zeros((1, CPAD), jnp.float32).at[0, :10].set(b1)
    # conv2: K-order ((kh*5+kw)*10 + ci); pad K->256, Cout 20->128.
    w2p = jnp.zeros((K2PAD, CPAD), jnp.float32).at[:250, :20].set(
        w2.transpose(2, 3, 1, 0).reshape(250, 20))
    b2p = jnp.zeros((1, CPAD), jnp.float32).at[0, :20].set(b2)
    # fc: absorb the PyTorch NCHW flatten order (idx = c*16 + s) into a
    # spatially-expanded weight wfperm[c, s*128 + n] = wf[n, c*16 + s].
    wf_r = wf.reshape(10, 20, P2)                                    # (n, c, s)
    WF = jnp.zeros((P2, CPAD, CPAD), jnp.float32).at[:, :20, :10].set(
        wf_r.transpose(2, 1, 0))                                     # (s, c, n)
    wfperm = WF.transpose(1, 0, 2).reshape(CPAD, P2 * CPAD)          # (c, s*128+n)
    bfp = jnp.zeros((1, CPAD), jnp.float32).at[0, :10].set(bf)
    # block-diagonal mask selecting the s == lane-block terms of the fc matmul
    fc_mask = jnp.repeat(jnp.eye(P2, dtype=jnp.float32), CPAD, axis=1)
    return (w1p, b1p, w2p, b2p, wfperm, fc_mask, bfp)


# ----------------------------------------------------------------------------
# Full forward pass (jitted)
# ----------------------------------------------------------------------------
@jax.jit
def cnn_forward(x, prep):
    w1p, b1p, w2p, b2p, wfperm, fc_mask, bfp = prep
    p1 = _im2col_conv1(x)                                   # (B, 576, 32)
    a1 = conv1_pool_relu(p1, w1p, b1p)                      # (B, 144, 128)
    p2 = _im2col_conv2(a1)                                  # (B, 64, 256)
    out = conv2_pool_relu_fc(p2, w2p, b2p, wfperm, fc_mask, bfp)  # (B, 1, 128)
    return out[:, 0, :10]                                   # (B, 10) logits


# Pure-JAX reference (for correctness checking only).
def ref_forward(x, params):
    w1, b1, w2, b2, wf, bf = params

    def conv(h, w, b):
        y = jax.lax.conv_general_dilated(
            h, w, (1, 1), "VALID", dimension_numbers=("NCHW", "OIHW", "NCHW"))
        return y + b[None, :, None, None]

    def pool(h):
        return jax.lax.reduce_window(
            h, -jnp.inf, jax.lax.max, (1, 1, 2, 2), (1, 1, 2, 2), "VALID")

    h = jax.nn.relu(pool(conv(x, w1, b1)))
    h = jax.nn.relu(pool(conv(h, w2, b2)))
    h = h.reshape(x.shape[0], -1)
    return h @ wf.T + bf


if __name__ == "__main__":
    key = jax.random.PRNGKey(0)
    ks = jax.random.split(key, 7)
    # Deterministic synthetic parameters (shapes from the PyTorch __init__).
    w1 = jax.random.normal(ks[0], (10, 1, 5, 5), jnp.float32) * 0.2
    b1 = jax.random.normal(ks[1], (10,), jnp.float32) * 0.1
    w2 = jax.random.normal(ks[2], (20, 10, 5, 5), jnp.float32) * 0.1
    b2 = jax.random.normal(ks[3], (20,), jnp.float32) * 0.1
    wf = jax.random.normal(ks[4], (10, 320), jnp.float32) * 0.05
    bf = jax.random.normal(ks[5], (10,), jnp.float32) * 0.1
    params = (w1, b1, w2, b2, wf, bf)

    # The fc layer (320 = 20*4*4) implies 28x28 single-channel input.
    x = jax.random.normal(ks[6], (2, 1, 28, 28), jnp.float32)

    prep = prepare_params(params)        # once, outside the per-call path
    out = jax.block_until_ready(cnn_forward(x, prep))
    ref = jax.block_until_ready(ref_forward(x, params))
    np.testing.assert_allclose(np.asarray(out), np.asarray(ref),
                               rtol=5e-3, atol=5e-3)
    print("KERNEL_OK")
</pallas_src>

<mosaic_0001>
module attributes {stable_mosaic.version = 11 : i64} {
  func.func @_conv1_pool_relu_kernel(%arg0: i32, %arg1: memref<1x576x32xf32, #tpu.memory_space<vmem>>, %arg2: memref<32x128xf32, #tpu.memory_space<vmem>>, %arg3: memref<1x128xf32, #tpu.memory_space<vmem>>, %arg4: memref<1x144x128xf32, #tpu.memory_space<vmem>>) attributes {dimension_semantics = [#tpu.dimension_semantics<parallel>], iteration_bounds = array<i64: 2>, scalar_prefetch = 0 : i64, scratch_operands = 0 : i64, tpu.core_type = #tpu.core_type<tc>, window_params = [{transform_indices = @transform_0, window_bounds = array<i64: 1, 576, 32>}, {pipeline_mode = #tpu.pipeline_mode<synchronous>, transform_indices = @transform_1, window_bounds = array<i64: 32, 128>}, {pipeline_mode = #tpu.pipeline_mode<synchronous>, transform_indices = @transform_2, window_bounds = array<i64: 1, 128>}, {transform_indices = @transform_3, window_bounds = array<i64: 1, 144, 128>}]} {
    %c0 = arith.constant 0 : index
    %c0_0 = arith.constant 0 : index
    %c0_1 = arith.constant 0 : index
    %0 = vector.load %arg1[%c0, %c0_0, %c0_1] : memref<1x576x32xf32, #tpu.memory_space<vmem>>, vector<1x576x32xf32>
    %1 = vector.shape_cast %0 : vector<1x576x32xf32> to vector<576x32xf32>
    %c0_2 = arith.constant 0 : index
    %c0_3 = arith.constant 0 : index
    %2 = vector.load %arg2[%c0_2, %c0_3] : memref<32x128xf32, #tpu.memory_space<vmem>>, vector<32x128xf32>
    %cst = arith.constant dense<0.000000e+00> : vector<576x128xf32>
    %3 = tpu.matmul %1, %2, %cst {dimension_numbers = #tpu.dot_dimension_numbers<[1], [0], [0], [1], [0, 0, 1, 1], [], []>} : vector<576x32xf32>, vector<32x128xf32>, vector<576x128xf32> -> vector<576x128xf32>
    %c0_4 = arith.constant 0 : index
    %c0_5 = arith.constant 0 : index
    %4 = vector.load %arg3[%c0_4, %c0_5] : memref<1x128xf32, #tpu.memory_space<vmem>>, vector<1x128xf32>
    %5 = vector.broadcast %4 : vector<1x128xf32> to vector<576x128xf32>
    %6 = arith.addf %3, %5 : vector<576x128xf32>
    %7 = vector.extract_strided_slice %6 {offsets = [0, 0], sizes = [144, 128], strides = [1, 1]} : vector<576x128xf32> to vector<144x128xf32>
    %8 = vector.extract_strided_slice %6 {offsets = [144, 0], sizes = [144, 128], strides = [1, 1]} : vector<576x128xf32> to vector<144x128xf32>
    %9 = arith.maximumf %7, %8 : vector<144x128xf32>
    %10 = vector.extract_strided_slice %6 {offsets = [288, 0], sizes = [144, 128], strides = [1, 1]} : vector<576x128xf32> to vector<144x128xf32>
    %11 = vector.extract_strided_slice %6 {offsets = [432, 0], sizes = [144, 128], strides = [1, 1]} : vector<576x128xf32> to vector<144x128xf32>
    %12 = arith.maximumf %10, %11 : vector<144x128xf32>
    %13 = arith.maximumf %9, %12 : vector<144x128xf32>
    %cst_6 = arith.constant 0.000000e+00 : f32
    %14 = vector.broadcast %cst_6 : f32 to vector<144x128xf32>
    %15 = arith.maximumf %13, %14 : vector<144x128xf32>
    %c0_7 = arith.constant 0 : index
    %c0_8 = arith.constant 0 : index
    %c0_9 = arith.constant 0 : index
    %16 = vector.load %arg4[%c0_7, %c0_8, %c0_9] : memref<1x144x128xf32, #tpu.memory_space<vmem>>, vector<1x144x128xf32>
    %17 = vector.shape_cast %16 : vector<1x144x128xf32> to vector<144x128xf32>
    %18 = vector.shape_cast %15 : vector<144x128xf32> to vector<1x144x128xf32>
    tpu.vector_store %arg4[%c0_7, %c0_8, %c0_9], %18 {strides = array<i32>} : memref<1x144x128xf32, #tpu.memory_space<vmem>>, vector<1x144x128xf32>,
    return
  }
  func.func @transform_0(%arg0: i32) -> (i32, i32, i32) {
    %c0_i32 = arith.constant 0 : i32
    %c0_i32_0 = arith.constant 0 : i32
    %c0_i32_1 = arith.constant 0 : i32
    return %arg0, %c0_i32, %c0_i32_0 : i32, i32, i32
  }
  func.func @transform_1(%arg0: i32) -> (i32, i32) {
    %c0_i32 = arith.constant 0 : i32
    %c0_i32_0 = arith.constant 0 : i32
    %c0_i32_1 = arith.constant 0 : i32
    return %c0_i32, %c0_i32_0 : i32, i32
  }
  func.func @transform_2(%arg0: i32) -> (i32, i32) {
    %c0_i32 = arith.constant 0 : i32
    %c0_i32_0 = arith.constant 0 : i32
    %c0_i32_1 = arith.constant 0 : i32
    return %c0_i32, %c0_i32_0 : i32, i32
  }
  func.func @transform_3(%arg0: i32) -> (i32, i32, i32) {
    %c0_i32 = arith.constant 0 : i32
    %c0_i32_0 = arith.constant 0 : i32
    %c0_i32_1 = arith.constant 0 : i32
    return %arg0, %c0_i32, %c0_i32_0 : i32, i32, i32
  }
}

module attributes {stable_mosaic.version = 11 : i64} {
  func.func @_conv2_pool_relu_fc_kernel(%arg0: i32, %arg1: memref<1x64x256xf32, #tpu.memory_space<vmem>>, %arg2: memref<256x128xf32, #tpu.memory_space<vmem>>, %arg3: memref<1x128xf32, #tpu.memory_space<vmem>>, %arg4: memref<128x2048xf32, #tpu.memory_space<vmem>>, %arg5: memref<16x2048xf32, #tpu.memory_space<vmem>>, %arg6: memref<1x128xf32, #tpu.memory_space<vmem>>, %arg7: memref<1x1x128xf32, #tpu.memory_space<vmem>>) attributes {dimension_semantics = [#tpu.dimension_semantics<parallel>], iteration_bounds = array<i64: 2>, scalar_prefetch = 0 : i64, scratch_operands = 0 : i64, tpu.core_type = #tpu.core_type<tc>, window_params = [{transform_indices = @transform_0, window_bounds = array<i64: 1, 64, 256>}, {pipeline_mode = #tpu.pipeline_mode<synchronous>, transform_indices = @transform_1, window_bounds = array<i64: 256, 128>}, {pipeline_mode = #tpu.pipeline_mode<synchronous>, transform_indices = @transform_2, window_bounds = array<i64: 1, 128>}, {pipeline_mode = #tpu.pipeline_mode<synchronous>, transform_indices = @transform_3, window_bounds = array<i64: 128, 2048>}, {pipeline_mode = #tpu.pipeline_mode<synchronous>, transform_indices = @transform_4, window_bounds = array<i64: 16, 2048>}, {pipeline_mode = #tpu.pipeline_mode<synchronous>, transform_indices = @transform_5, window_bounds = array<i64: 1, 128>}, {transform_indices = @transform_6, window_bounds = array<i64: 1, 1, 128>}]} {
    %c0 = arith.constant 0 : index
    %c0_0 = arith.constant 0 : index
    %c0_1 = arith.constant 0 : index
    %0 = vector.load %arg1[%c0, %c0_0, %c0_1] : memref<1x64x256xf32, #tpu.memory_space<vmem>>, vector<1x64x256xf32>
    %1 = vector.shape_cast %0 : vector<1x64x256xf32> to vector<64x256xf32>
    %c0_2 = arith.constant 0 : index
    %c0_3 = arith.constant 0 : index
    %2 = vector.load %arg2[%c0_2, %c0_3] : memref<256x128xf32, #tpu.memory_space<vmem>>, vector<256x128xf32>
    %cst = arith.constant dense<0.000000e+00> : vector<64x128xf32>
    %3 = tpu.matmul %1, %2, %cst {dimension_numbers = #tpu.dot_dimension_numbers<[1], [0], [0], [1], [0, 0, 1, 1], [], []>} : vector<64x256xf32>, vector<256x128xf32>, vector<64x128xf32> -> vector<64x128xf32>
    %c0_4 = arith.constant 0 : index
    %c0_5 = arith.constant 0 : index
    %4 = vector.load %arg3[%c0_4, %c0_5] : memref<1x128xf32, #tpu.memory_space<vmem>>, vector<1x128xf32>
    %5 = vector.broadcast %4 : vector<1x128xf32> to vector<64x128xf32>
    %6 = arith.addf %3, %5 : vector<64x128xf32>
    %7 = vector.extract_strided_slice %6 {offsets = [0, 0], sizes = [16, 128], strides = [1, 1]} : vector<64x128xf32> to vector<16x128xf32>
    %8 = vector.extract_strided_slice %6 {offsets = [16, 0], sizes = [16, 128], strides = [1, 1]} : vector<64x128xf32> to vector<16x128xf32>
    %9 = arith.maximumf %7, %8 : vector<16x128xf32>
    %10 = vector.extract_strided_slice %6 {offsets = [32, 0], sizes = [16, 128], strides = [1, 1]} : vector<64x128xf32> to vector<16x128xf32>
    %11 = vector.extract_strided_slice %6 {offsets = [48, 0], sizes = [16, 128], strides = [1, 1]} : vector<64x128xf32> to vector<16x128xf32>
    %12 = arith.maximumf %10, %11 : vector<16x128xf32>
    %13 = arith.maximumf %9, %12 : vector<16x128xf32>
    %cst_6 = arith.constant 0.000000e+00 : f32
    %14 = vector.broadcast %cst_6 : f32 to vector<16x128xf32>
    %15 = arith.maximumf %13, %14 : vector<16x128xf32>
    %c0_7 = arith.constant 0 : index
    %c0_8 = arith.constant 0 : index
    %16 = vector.load %arg4[%c0_7, %c0_8] : memref<128x2048xf32, #tpu.memory_space<vmem>>, vector<128x2048xf32>
    %cst_9 = arith.constant dense<0.000000e+00> : vector<16x2048xf32>
    %17 = tpu.matmul %15, %16, %cst_9 {dimension_numbers = #tpu.dot_dimension_numbers<[1], [0], [0], [1], [0, 0, 1, 1], [], []>} : vector<16x128xf32>, vector<128x2048xf32>, vector<16x2048xf32> -> vector<16x2048xf32>
    %c0_10 = arith.constant 0 : index
    %c0_11 = arith.constant 0 : index
    %18 = vector.load %arg5[%c0_10, %c0_11] : memref<16x2048xf32, #tpu.memory_space<vmem>>, vector<16x2048xf32>
    %19 = arith.mulf %17, %18 : vector<16x2048xf32>
    %cst_12 = arith.constant dense<0.000000e+00> : vector<2048xf32>
    %20 = vector.multi_reduction <add>, %19, %cst_12 [0] : vector<16x2048xf32> to vector<2048xf32>
    %21 = vector.shape_cast %20 : vector<2048xf32> to vector<1x2048xf32>
    %c0_13 = arith.constant 0 : index
    %c0_14 = arith.constant 0 : index
    %22 = vector.load %arg6[%c0_13, %c0_14] : memref<1x128xf32, #tpu.memory_space<vmem>>, vector<1x128xf32>
    %23 = vector.extract_strided_slice %21 {offsets = [0, 0], sizes = [1, 128], strides = [1, 1]} : vector<1x2048xf32> to vector<1x128xf32>
    %24 = arith.addf %22, %23 : vector<1x128xf32>
    %25 = vector.extract_strided_slice %21 {offsets = [0, 128], sizes = [1, 128], strides = [1, 1]} : vector<1x2048xf32> to vector<1x128xf32>
    %26 = arith.addf %24, %25 : vector<1x128xf32>
    %27 = vector.extract_strided_slice %21 {offsets = [0, 256], sizes = [1, 128], strides = [1, 1]} : vector<1x2048xf32> to vector<1x128xf32>
    %28 = arith.addf %26, %27 : vector<1x128xf32>
    %29 = vector.extract_strided_slice %21 {offsets = [0, 384], sizes = [1, 128], strides = [1, 1]} : vector<1x2048xf32> to vector<1x128xf32>
    %30 = arith.addf %28, %29 : vector<1x128xf32>
    %31 = vector.extract_strided_slice %21 {offsets = [0, 512], sizes = [1, 128], strides = [1, 1]} : vector<1x2048xf32> to vector<1x128xf32>
    %32 = arith.addf %30, %31 : vector<1x128xf32>
    %33 = vector.extract_strided_slice %21 {offsets = [0, 640], sizes = [1, 128], strides = [1, 1]} : vector<1x2048xf32> to vector<1x128xf32>
    %34 = arith.addf %32, %33 : vector<1x128xf32>
    %35 = vector.extract_strided_slice %21 {offsets = [0, 768], sizes = [1, 128], strides = [1, 1]} : vector<1x2048xf32> to vector<1x128xf32>
    %36 = arith.addf %34, %35 : vector<1x128xf32>
    %37 = vector.extract_strided_slice %21 {offsets = [0, 896], sizes = [1, 128], strides = [1, 1]} : vector<1x2048xf32> to vector<1x128xf32>
    %38 = arith.addf %36, %37 : vector<1x128xf32>
    %39 = vector.extract_strided_slice %21 {offsets = [0, 1024], sizes = [1, 128], strides = [1, 1]} : vector<1x2048xf32> to vector<1x128xf32>
    %40 = arith.addf %38, %39 : vector<1x128xf32>
    %41 = vector.extract_strided_slice %21 {offsets = [0, 1152], sizes = [1, 128], strides = [1, 1]} : vector<1x2048xf32> to vector<1x128xf32>
    %42 = arith.addf %40, %41 : vector<1x128xf32>
    %43 = vector.extract_strided_slice %21 {offsets = [0, 1280], sizes = [1, 128], strides = [1, 1]} : vector<1x2048xf32> to vector<1x128xf32>
    %44 = arith.addf %42, %43 : vector<1x128xf32>
    %45 = vector.extract_strided_slice %21 {offsets = [0, 1408], sizes = [1, 128], strides = [1, 1]} : vector<1x2048xf32> to vector<1x128xf32>
    %46 = arith.addf %44, %45 : vector<1x128xf32>
    %47 = vector.extract_strided_slice %21 {offsets = [0, 1536], sizes = [1, 128], strides = [1, 1]} : vector<1x2048xf32> to vector<1x128xf32>
    %48 = arith.addf %46, %47 : vector<1x128xf32>
    %49 = vector.extract_strided_slice %21 {offsets = [0, 1664], sizes = [1, 128], strides = [1, 1]} : vector<1x2048xf32> to vector<1x128xf32>
    %50 = arith.addf %48, %49 : vector<1x128xf32>
    %51 = vector.extract_strided_slice %21 {offsets = [0, 1792], sizes = [1, 128], strides = [1, 1]} : vector<1x2048xf32> to vector<1x128xf32>
    %52 = arith.addf %50, %51 : vector<1x128xf32>
    %53 = vector.extract_strided_slice %21 {offsets = [0, 1920], sizes = [1, 128], strides = [1, 1]} : vector<1x2048xf32> to vector<1x128xf32>
    %54 = arith.addf %52, %53 : vector<1x128xf32>
    %c0_15 = arith.constant 0 : index
    %c0_16 = arith.constant 0 : index
    %c0_17 = arith.constant 0 : index
    %55 = vector.load %arg7[%c0_15, %c0_16, %c0_17] : memref<1x1x128xf32, #tpu.memory_space<vmem>>, vector<1x1x128xf32>
    %56 = vector.shape_cast %55 : vector<1x1x128xf32> to vector<1x128xf32>
    %57 = vector.shape_cast %54 : vector<1x128xf32> to vector<1x1x128xf32>
    tpu.vector_store %arg7[%c0_15, %c0_16, %c0_17], %57 {strides = array<i32>} : memref<1x1x128xf32, #tpu.memory_space<vmem>>, vector<1x1x128xf32>,
    return
  }
  func.func @transform_0(%arg0: i32) -> (i32, i32, i32) {
    %c0_i32 = arith.constant 0 : i32
    %c0_i32_0 = arith.constant 0 : i32
    %c0_i32_1 = arith.constant 0 : i32
    return %arg0, %c0_i32, %c0_i32_0 : i32, i32, i32
  }
  func.func @transform_1(%arg0: i32) -> (i32, i32) {
    %c0_i32 = arith.constant 0 : i32
    %c0_i32_0 = arith.constant 0 : i32
    %c0_i32_1 = arith.constant 0 : i32
    return %c0_i32, %c0_i32_0 : i32, i32
  }
  func.func @transform_2(%arg0: i32) -> (i32, i32) {
    %c0_i32 = arith.constant 0 : i32
    %c0_i32_0 = arith.constant 0 : i32
    %c0_i32_1 = arith.constant 0 : i32
    return %c0_i32, %c0_i32_0 : i32, i32
  }
  func.func @transform_3(%arg0: i32) -> (i32, i32) {
    %c0_i32 = arith.constant 0 : i32
    %c0_i32_0 = arith.constant 0 : i32
    %c0_i32_1 = arith.constant 0 : i32
    return %c0_i32, %c0_i32_0 : i32, i32
  }
  func.func @transform_4(%arg0: i32) -> (i32, i32) {
    %c0_i32 = arith.constant 0 : i32
    %c0_i32_0 = arith.constant 0 : i32
    %c0_i32_1 = arith.constant 0 : i32
    return %c0_i32, %c0_i32_0 : i32, i32
  }
  func.func @transform_5(%arg0: i32) -> (i32, i32) {
    %c0_i32 = arith.constant 0 : i32
    %c0_i32_0 = arith.constant 0 : i32
    %c0_i32_1 = arith.constant 0 : i32
    return %c0_i32, %c0_i32_0 : i32, i32
  }
  func.func @transform_6(%arg0: i32) -> (i32, i32, i32) {
    %c0_i32 = arith.constant 0 : i32
    %c0_i32_0 = arith.constant 0 : i32
    %c0_i32_1 = arith.constant 0 : i32
    return %arg0, %c0_i32, %c0_i32_0 : i32, i32, i32
  }
}

</mosaic_0001>

<llo_original>
// kernel: cnn_forward.2
$region0: #{cnn_forward.2}
  #allocation0 [shape = 'u32[]', space=smem, size = 0x4, offset = 0x4, fixed_abs, tag = 'smem constant byte address 0x4 - core index']
  #allocation1 [shape = 'u32[72,128]{1,0:T(1,128)}', space=vmem, size = 0x9000, scoped, tag = 'internal scratch']
  %s0 = inlined_call_operand.vmem [shape: f32[2,576,32], index: 0, kind: input, shape index: {}]
  %s1 = inlined_call_operand.vmem [shape: f32[32,128], index: 1, kind: input, shape index: {}]
  %s2 = inlined_call_operand.vmem [shape: f32[1,128], index: 2, kind: input, shape index: {}]
  %s3 = inlined_call_operand.vmem [shape: f32[2,144,128], index: 3, kind: output, shape index: {}]
  %s4 = sld [smem:[#allocation0]]
  $region45: #{cnn_forward.2} parent=0
    _
  %s6 = ssub.s32 1, %s4
  %s7 = scalar_select 0, %s6, %s4
  loop: start=0, step=1, limit=4
  $region2: #{cnn_forward.2} parent=0 // loop_pre_header
    _
  $region3: #{cnn_forward.2} parent=0 // loop_header
    %s9 = sphi 0, %s13
    %p10 = scmp.ge.s32.totalorder %s9, 4
    %s19 = sphi 0, %s21
    %s22 = sphi 0, %s19
    %s23 = sphi 0, %s22
    %s39 = sphi 0, %s23
    %s43 = sphi 0, %s43
    %s45 = sphi 0, %s43
    %s46 = sphi 0, %s45
    %s60 = sphi 0, %s46
    %s64 = sphi 0, %s64
    %s66 = sphi 0, %s64
    %s67 = sphi 0, %s66
    %s81 = sphi 0, %s67
    %s87 = sphi 0, %s89
    %s90 = sphi 0, %s87
    %s91 = sphi 0, %s90
    %s107 = sphi 0, %s91
  $region4: #{cnn_forward.2} parent=0 // loop_header_branch
    %12 = sbr.rel (%p10) target = $region8
  $region5: #{cnn_forward.2} parent=0 // loop_body
    %s14 = ssub.s32 %s9, 1
    %s15 = ssub.s32 %s9, 2
    %s16 = sadd.s32 %s9, 1
    %s17 = ssub.s32 %s9, %s16
    %p18 = scmp.eq.s32.totalorder %s17, 0
    %s20 = sadd.s32 %s19, 1
    %s21 = scalar_select %p18, %s19, %s20
    %p24 = pneg %p18
    %p25 = scmp.eq.s32.totalorder %s9, 1
    %p26 = por %p24, %p25
    %p27 = scmp.ne.s32.totalorder %s19, %s22
    %p28 = scmp.eq.s32.totalorder %s9, 0
    %p29 = por %p27, %p28
    %p30 = scmp.ne.s32.totalorder %s19, %s22
    %p31 = scmp.eq.s32.totalorder %s14, 1
    %p32 = por %p30, %p31
    %p33 = scmp.ne.s32.totalorder %s22, %s23
    %p34 = scmp.eq.s32.totalorder %s14, 0
    %p35 = por %p33, %p34
    %p36 = scmp.ne.s32.totalorder %s22, %s23
    %p37 = scmp.eq.s32.totalorder %s15, 1
    %p38 = por %p36, %p37
    %p40 = scmp.ne.s32.totalorder %s23, %s39
    %p41 = scmp.eq.s32.totalorder %s15, 0
    %p42 = por %p40, %p41
    %s44 = sadd.s32 %s43, 1
    %p47 = scmp.eq.s32.totalorder %s9, 1
    %p48 = scmp.ne.s32.totalorder %s43, %s45
    %p49 = scmp.eq.s32.totalorder %s9, 0
    %p50 = por %p48, %p49
    %p51 = scmp.ne.s32.totalorder %s43, %s45
    %p52 = scmp.eq.s32.totalorder %s14, 1
    %p53 = por %p51, %p52
    %p54 = scmp.ne.s32.totalorder %s45, %s46
    %p55 = scmp.eq.s32.totalorder %s14, 0
    %p56 = por %p54, %p55
    %p57 = scmp.ne.s32.totalorder %s45, %s46
    %p58 = scmp.eq.s32.totalorder %s15, 1
    %p59 = por %p57, %p58
    %p61 = scmp.ne.s32.totalorder %s46, %s60
    %p62 = scmp.eq.s32.totalorder %s15, 0
    %p63 = por %p61, %p62
    %s65 = sadd.s32 %s64, 1
    %p68 = scmp.eq.s32.totalorder %s9, 1
    %p69 = scmp.ne.s32.totalorder %s64, %s66
    %p70 = scmp.eq.s32.totalorder %s9, 0
    %p71 = por %p69, %p70
    %p72 = scmp.ne.s32.totalorder %s64, %s66
    %p73 = scmp.eq.s32.totalorder %s14, 1
    %p74 = por %p72, %p73
    %p75 = scmp.ne.s32.totalorder %s66, %s67
    %p76 = scmp.eq.s32.totalorder %s14, 0
    %p77 = por %p75, %p76
    %p78 = scmp.ne.s32.totalorder %s66, %s67
    %p79 = scmp.eq.s32.totalorder %s15, 1
    %p80 = por %p78, %p79
    %p82 = scmp.ne.s32.totalorder %s67, %s81
    %p83 = scmp.eq.s32.totalorder %s15, 0
    %p84 = por %p82, %p83
    %s85 = ssub.s32 %s9, %s16
    %p86 = scmp.eq.s32.totalorder %s85, 0
    %s88 = sadd.s32 %s87, 1
    %s89 = scalar_select %p86, %s87, %s88
    %p92 = pneg %p86
    %p93 = scmp.eq.s32.totalorder %s9, 1
    %p94 = por %p92, %p93
    %p95 = scmp.ne.s32.totalorder %s87, %s90
    %p96 = scmp.eq.s32.totalorder %s9, 0
    %p97 = por %p95, %p96
    %p98 = scmp.ne.s32.totalorder %s87, %s90
    %p99 = scmp.eq.s32.totalorder %s14, 1
    %p100 = por %p98, %p99
    %p101 = scmp.ne.s32.totalorder %s90, %s91
    %p102 = scmp.eq.s32.totalorder %s14, 0
    %p103 = por %p101, %p102
    %p104 = scmp.ne.s32.totalorder %s90, %s91
    %p105 = scmp.eq.s32.totalorder %s15, 1
    %p106 = por %p104, %p105
    %p108 = scmp.ne.s32.totalorder %s91, %s107
    %p109 = scmp.eq.s32.totalorder %s15, 0
    %p110 = por %p108, %p109
    %p111 = scmp.le.s32.totalorder 1, %s9
    %p112 = scmp.lt.s32.totalorder %s9, 3
    %p113 = pnand %p111, %p112
    %p114 = pneg %p113
    // Predicated region
    $region9: #{cnn_forward.2} parent=5 // pred_check
      _
    $region10: #{cnn_forward.2} parent=5 // pred_check_branch
      %116 = sbr.rel (%p113) target = $region12
    $region11: #{cnn_forward.2} parent=5 // pred_region
      %s117 = ssub.s32 %s9, 1
      // Predicated region
      $region13: #{cnn_forward.2} parent=11 // pred_check
        %p118 = pneg %p56
      $region14: #{cnn_forward.2} parent=11 // pred_check_branch
        %120 = sbr.rel (%p118) target = $region16
      $region15: #{cnn_forward.2} parent=11 // pred_region
        _
      $region16: #{cnn_forward.2} parent=11 // pred_fallthru
        _
      // Predicated region
      $region17: #{cnn_forward.2} parent=11 // pred_check
        %p121 = pneg %p77
      $region18: #{cnn_forward.2} parent=11 // pred_check_branch
        %123 = sbr.rel (%p121) target = $region20
      $region19: #{cnn_forward.2} parent=11 // pred_region
        _
      $region20: #{cnn_forward.2} parent=11 // pred_fallthru
        _
    $region12: #{cnn_forward.2} parent=5 // pred_fallthru
      _
    %p124 = scmp.lt.s32.totalorder %s9, 2
    // Predicated region
    $region21: #{cnn_forward.2} parent=5 // pred_check
      %p125 = pneg %p124
    $region22: #{cnn_forward.2} parent=5 // pred_check_branch
      %127 = sbr.rel (%p125) target = $region24
    $region23: #{cnn_forward.2} parent=5 // pred_region
      // Predicated region
      $region25: #{cnn_forward.2} parent=23 // pred_check
        %p128 = pneg %p29
      $region26: #{cnn_forward.2} parent=23 // pred_check_branch
        %130 = sbr.rel (%p128) target = $region28
      $region27: #{cnn_forward.2} parent=23 // pred_region
        %p131 = scmp.lt.s32.totalorder %s9, 1
        %s132 = scalar_select %p131, %s9, 1
        %s133 = smul.addr %s132, 72
        %s134 = smul.addr %s133, 8
        %s135 = scalar_lea.vmem %s0, %s134
      $region28: #{cnn_forward.2} parent=23 // pred_fallthru
        _
    $region24: #{cnn_forward.2} parent=5 // pred_fallthru
      _
    %p136 = scmp.le.s32.totalorder 1, %s9
    %p137 = scmp.lt.s32.totalorder %s9, 3
    %p138 = pnand %p136, %p137
    %p139 = pneg %p138
    // Predicated region
    $region29: #{cnn_forward.2} parent=5 // pred_check
      _
    $region30: #{cnn_forward.2} parent=5 // pred_check_branch
      %141 = sbr.rel (%p138) target = $region32
    $region31: #{cnn_forward.2} parent=5 // pred_region
      %s142 = ssub.s32 %s9, 1
      %p143 = scmp.lt.s32.totalorder %s14, 1
      %s144 = scalar_select %p143, %s14, 1
      %s145 = smul.addr %s144, 72
      %s146 = smul.addr %s145, 8
      %s147 = scalar_lea.vmem %s0, %s146
      %p148 = pneg %p35
      %p149 = pneg %p32
      %p150 = pneg %p56
      %p151 = pneg %p53
      %p152 = pneg %p77
      %p153 = pneg %p74
      %p154 = pneg %p103
      %p155 = pneg %p100
      %p156 = scmp.lt.s32.totalorder %s14, 1
      %s157 = scalar_select %p156, %s14, 1
      %s158 = smul.addr %s157, 18
      %s159 = smul.addr %s158, 8
      %s160 = scalar_lea.vmem %s3, %s159
      %p161 = scmp.lt.s32.totalorder %s14, 1
      %s162 = scalar_select %p161, %s14, 1
      %s163 = smul.addr %s162, 72
      %s164 = smul.addr %s163, 8
      %s165 = scalar_lea.vmem %s0, %s164
      %p166 = scmp.lt.s32.totalorder %s14, 1
      %s167 = scalar_select %p166, %s14, 1
      %s168 = smul.addr %s167, 18
      %s169 = smul.addr %s168, 8
      %s170 = scalar_lea.vmem %s3, %s169
      %v171 = vld [vmem:[%s165] sm:$0xff]
      %v172 = vld [vmem:[%s165 + $0x8] sm:$0xff]
      %v173 = vld [vmem:[%s165 + $0x10] sm:$0xff]
      %v174 = vld [vmem:[%s165 + $0x18] sm:$0xff]
      %v175 = vld [vmem:[%s165 + $0x20] sm:$0xff]
      %v176 = vld [vmem:[%s165 + $0x28] sm:$0xff]
      %v177 = vld [vmem:[%s165 + $0x30] sm:$0xff]
      %v178 = vld [vmem:[%s165 + $0x38] sm:$0xff]
      %v179 = vld [vmem:[%s165 + $0x40] sm:$0xff]
      %v180 = vld [vmem:[%s165 + $0x48] sm:$0xff]
      %v181 = vld [vmem:[%s165 + $0x50] sm:$0xff]
      %v182 = vld [vmem:[%s165 + $0x58] sm:$0xff]
      %v183 = vld [vmem:[%s165 + $0x60] sm:$0xff]
      %v184 = vld [vmem:[%s165 + $0x68] sm:$0xff]
      %v185 = vld [vmem:[%s165 + $0x70] sm:$0xff]
      %v186 = vld [vmem:[%s165 + $0x78] sm:$0xff]
      %v187 = vld [vmem:[%s165 + $0x80] sm:$0xff]
      %v188 = vld [vmem:[%s165 + $0x88] sm:$0xff]
      %v189 = vld [vmem:[%s165 + $0x90] sm:$0xff]
      %v190 = vld [vmem:[%s165 + $0x98] sm:$0xff]
      %v191 = vld [vmem:[%s165 + $0xa0] sm:$0xff]
      %v192 = vld [vmem:[%s165 + $0xa8] sm:$0xff]
      %v193 = vld [vmem:[%s165 + $0xb0] sm:$0xff]
      %v194 = vld [vmem:[%s165 + $0xb8] sm:$0xff]
      %v195 = vld [vmem:[%s165 + $0xc0] sm:$0xff]
      %v196 = vld [vmem:[%s165 + $0xc8] sm:$0xff]
      %v197 = vld [vmem:[%s165 + $0xd0] sm:$0xff]
      %v198 = vld [vmem:[%s165 + $0xd8] sm:$0xff]
      %v199 = vld [vmem:[%s165 + $0xe0] sm:$0xff]
      %v200 = vld [vmem:[%s165 + $0xe8] sm:$0xff]
      %v201 = vld [vmem:[%s165 + $0xf0] sm:$0xff]
      %v202 = vld [vmem:[%s165 + $0xf8] sm:$0xff]
      %v203 = vld [vmem:[%s165 + $0x100] sm:$0xff]
      %v204 = vld [vmem:[%s165 + $0x108] sm:$0xff]
      %v205 = vld [vmem:[%s165 + $0x110] sm:$0xff]
      %v206 = vld [vmem:[%s165 + $0x118] sm:$0xff]
      %v207 = vld [vmem:[%s165 + $0x120] sm:$0xff]
      %v208 = vld [vmem:[%s165 + $0x128] sm:$0xff]
      %v209 = vld [vmem:[%s165 + $0x130] sm:$0xff]
      %v210 = vld [vmem:[%s165 + $0x138] sm:$0xff]
      %v211 = vld [vmem:[%s165 + $0x140] sm:$0xff]
      %v212 = vld [vmem:[%s165 + $0x148] sm:$0xff]
      %v213 = vld [vmem:[%s165 + $0x150] sm:$0xff]
      %v214 = vld [vmem:[%s165 + $0x158] sm:$0xff]
      %v215 = vld [vmem:[%s165 + $0x160] sm:$0xff]
      %v216 = vld [vmem:[%s165 + $0x168] sm:$0xff]
      %v217 = vld [vmem:[%s165 + $0x170] sm:$0xff]
      %v218 = vld [vmem:[%s165 + $0x178] sm:$0xff]
      %v219 = vld [vmem:[%s165 + $0x180] sm:$0xff]
      %v220 = vld [vmem:[%s165 + $0x188] sm:$0xff]
      %v221 = vld [vmem:[%s165 + $0x190] sm:$0xff]
      %v222 = vld [vmem:[%s165 + $0x198] sm:$0xff]
      %v223 = vld [vmem:[%s165 + $0x1a0] sm:$0xff]
      %v224 = vld [vmem:[%s165 + $0x1a8] sm:$0xff]
      %v225 = vld [vmem:[%s165 + $0x1b0] sm:$0xff]
      %v226 = vld [vmem:[%s165 + $0x1b8] sm:$0xff]
      %v227 = vld [vmem:[%s165 + $0x1c0] sm:$0xff]
      %v228 = vld [vmem:[%s165 + $0x1c8] sm:$0xff]
      %v229 = vld [vmem:[%s165 + $0x1d0] sm:$0xff]
      %v230 = vld [vmem:[%s165 + $0x1d8] sm:$0xff]
      %v231 = vld [vmem:[%s165 + $0x1e0] sm:$0xff]
      %v232 = vld [vmem:[%s165 + $0x1e8] sm:$0xff]
      %v233 = vld [vmem:[%s165 + $0x1f0] sm:$0xff]
      %v234 = vld [vmem:[%s165 + $0x1f8] sm:$0xff]
      %v235 = vld [vmem:[%s165 + $0x200] sm:$0xff]
      %v236 = vld [vmem:[%s165 + $0x208] sm:$0xff]
      %v237 = vld [vmem:[%s165 + $0x210] sm:$0xff]
      %v238 = vld [vmem:[%s165 + $0x218] sm:$0xff]
      %v239 = vld [vmem:[%s165 + $0x220] sm:$0xff]
      %v240 = vld [vmem:[%s165 + $0x228] sm:$0xff]
      %v241 = vld [vmem:[%s165 + $0x230] sm:$0xff]
      %v242 = vld [vmem:[%s165 + $0x238] sm:$0xff]
      %v243 = vld [vmem:[%s1] sm:$0xff]
      %v244 = vld [vmem:[%s1 + $0x8] sm:$0xff]
      %v245 = vld [vmem:[%s1 + $0x10] sm:$0xff]
      %v246 = vld [vmem:[%s1 + $0x18] sm:$0xff]
      %v247 = vld [vmem:[%s2] sm:$0x1]
      %v249 = vperm.slane %v247, 0
      %vm251 = vcmask 261120
      %v253 = vsel %vm251, %v171, 0
      %v256 = vsel %vm251, %v172, 0
      %v259 = vsel %vm251, %v173, 0
      %v262 = vsel %vm251, %v174, 0
      %v265 = vsel %vm251, %v175, 0
      %v268 = vsel %vm251, %v176, 0
      %v271 = vsel %vm251, %v177, 0
      %v274 = vsel %vm251, %v178, 0
      %v277 = vsel %vm251, %v179, 0
      %v280 = vsel %vm251, %v180, 0
      %v283 = vsel %vm251, %v181, 0
      %v286 = vsel %vm251, %v182, 0
      %v289 = vsel %vm251, %v183, 0
      %v292 = vsel %vm251, %v184, 0
      %v295 = vsel %vm251, %v185, 0
      %v298 = vsel %vm251, %v186, 0
      %v301 = vsel %vm251, %v187, 0
      %v304 = vsel %vm251, %v188, 0
      %v307 = vsel %vm251, %v189, 0
      %v310 = vsel %vm251, %v190, 0
      %v313 = vsel %vm251, %v191, 0
      %v316 = vsel %vm251, %v192, 0
      %v319 = vsel %vm251, %v193, 0
      %v322 = vsel %vm251, %v194, 0
      %v325 = vsel %vm251, %v195, 0
      %v328 = vsel %vm251, %v196, 0
      %v331 = vsel %vm251, %v197, 0
      %v334 = vsel %vm251, %v198, 0
      %v337 = vsel %vm251, %v199, 0
      %v340 = vsel %vm251, %v200, 0
      %v343 = vsel %vm251, %v201, 0
      %v346 = vsel %vm251, %v202, 0
      %v349 = vsel %vm251, %v203, 0
      %v352 = vsel %vm251, %v204, 0
      %v355 = vsel %vm251, %v205, 0
      %v358 = vsel %vm251, %v206, 0
      %v361 = vsel %vm251, %v207, 0
      %v364 = vsel %vm251, %v208, 0
      %v367 = vsel %vm251, %v209, 0
      %v370 = vsel %vm251, %v210, 0
      %v373 = vsel %vm251, %v211, 0
      %v376 = vsel %vm251, %v212, 0
      %v379 = vsel %vm251, %v213, 0
      %v382 = vsel %vm251, %v214, 0
      %v385 = vsel %vm251, %v215, 0
      %v388 = vsel %vm251, %v216, 0
      %v391 = vsel %vm251, %v217, 0
      %v394 = vsel %vm251, %v218, 0
      %v397 = vsel %vm251, %v219, 0
      %v400 = vsel %vm251, %v220, 0
      %v403 = vsel %vm251, %v221, 0
      %v406 = vsel %vm251, %v222, 0
      %v409 = vsel %vm251, %v223, 0
      %v412 = vsel %vm251, %v224, 0
      %v415 = vsel %vm251, %v225, 0
      %v418 = vsel %vm251, %v226, 0
      %v421 = vsel %vm251, %v227, 0
      %v424 = vsel %vm251, %v228, 0
      %v427 = vsel %vm251, %v229, 0
      %v430 = vsel %vm251, %v230, 0
      %v433 = vsel %vm251, %v231, 0
      %v436 = vsel %vm251, %v232, 0
      %v439 = vsel %vm251, %v233, 0
      %v442 = vsel %vm251, %v234, 0
      %v445 = vsel %vm251, %v235, 0
      %v448 = vsel %vm251, %v236, 0
      %v451 = vsel %vm251, %v237, 0
      %v454 = vsel %vm251, %v238, 0
      %v457 = vsel %vm251, %v239, 0
      %v460 = vsel %vm251, %v240, 0
      %v463 = vsel %vm251, %v241, 0
      %v466 = vsel %vm251, %v242, 0
      %468 = vmatpush.msra.mxu0 0.0
      %469 = vmatpush.msra.mxu0 0.0
      %470 = vmatpush.msra.mxu0 0.0
      %471 = vmatpush.msra.mxu0 0.0
      %472 = vmatpush.msra.mxu0 0.0
      %473 = vmatpush.msra.mxu0 0.0
      %474 = vmatpush.msra.mxu0 0.0
      %475 = vmatpush.msra.mxu0 0.0
      %476 = vmatpush.msra.mxu0 0.0
      %477 = vmatpush.msra.mxu0 0.0
      %478 = vmatpush.msra.mxu0 0.0
      %479 = vmatpush.msra.mxu0 0.0
      %480 = vmatpush.msra.mxu0 %v246
      %481 = vmatpush.msra.mxu0 %v245
      %482 = vmatpush.msra.mxu0 %v244
      %483 = vmatpush.msra.mxu0 %v243
      %484 = vmatmul.f32.gmra.mxu0 %v253
      %v485 = vpop.f32.mrf.mxu0
      %v486 = vadd.f32 %v249, %v485
      %487 = vmatmul.f32.gmra.mxu0 %v256
      %v488 = vpop.f32.mrf.mxu0
      %v489 = vadd.f32 %v249, %v488
      %490 = vmatmul.f32.gmra.mxu0 %v259
      %v491 = vpop.f32.mrf.mxu0
      %v492 = vadd.f32 %v249, %v491
      %493 = vmatmul.f32.gmra.mxu0 %v262
      %v494 = vpop.f32.mrf.mxu0
      %v495 = vadd.f32 %v249, %v494
      %496 = vmatmul.f32.gmra.mxu0 %v265
      %v497 = vpop.f32.mrf.mxu0
      %v498 = vadd.f32 %v249, %v497
      %499 = vmatmul.f32.gmra.mxu0 %v268
      %v500 = vpop.f32.mrf.mxu0
      %v501 = vadd.f32 %v249, %v500
      %502 = vmatmul.f32.gmra.mxu0 %v271
      %v503 = vpop.f32.mrf.mxu0
      %v504 = vadd.f32 %v249, %v503
      %505 = vmatmul.f32.gmra.mxu0 %v274
      %v506 = vpop.f32.mrf.mxu0
      %v507 = vadd.f32 %v249, %v506
      %508 = vmatmul.f32.gmra.mxu0 %v277
      %v509 = vpop.f32.mrf.mxu0
      %v510 = vadd.f32 %v249, %v509
      %511 = vmatmul.f32.gmra.mxu0 %v280
      %v512 = vpop.f32.mrf.mxu0
      %v513 = vadd.f32 %v249, %v512
      %514 = vmatmul.f32.gmra.mxu0 %v283
      %v515 = vpop.f32.mrf.mxu0
      %v516 = vadd.f32 %v249, %v515
      %517 = vmatmul.f32.gmra.mxu0 %v286
      %v518 = vpop.f32.mrf.mxu0
      %v519 = vadd.f32 %v249, %v518
      %520 = vmatmul.f32.gmra.mxu0 %v289
      %v521 = vpop.f32.mrf.mxu0
      %v522 = vadd.f32 %v249, %v521
      %523 = vmatmul.f32.gmra.mxu0 %v292
      %v524 = vpop.f32.mrf.mxu0
      %v525 = vadd.f32 %v249, %v524
      %526 = vmatmul.f32.gmra.mxu0 %v295
      %v527 = vpop.f32.mrf.mxu0
      %v528 = vadd.f32 %v249, %v527
      %529 = vmatmul.f32.gmra.mxu0 %v298
      %v530 = vpop.f32.mrf.mxu0
      %v531 = vadd.f32 %v249, %v530
      %532 = vmatmul.f32.gmra.mxu0 %v301
      %v533 = vpop.f32.mrf.mxu0
      %v534 = vadd.f32 %v249, %v533
      %535 = vmatmul.f32.gmra.mxu0 %v304
      %v536 = vpop.f32.mrf.mxu0
      %v537 = vadd.f32 %v249, %v536
      %538 = vmatmul.f32.gmra.mxu0 %v307
      %v539 = vpop.f32.mrf.mxu0
      %v540 = vadd.f32 %v249, %v539
      %541 = vmatmul.f32.gmra.mxu0 %v310
      %v542 = vpop.f32.mrf.mxu0
      %v543 = vadd.f32 %v249, %v542
      %544 = vmatmul.f32.gmra.mxu0 %v313
      %v545 = vpop.f32.mrf.mxu0
      %v546 = vadd.f32 %v249, %v545
      %547 = vmatmul.f32.gmra.mxu0 %v316
      %v548 = vpop.f32.mrf.mxu0
      %v549 = vadd.f32 %v249, %v548
      %550 = vmatmul.f32.gmra.mxu0 %v319
      %v551 = vpop.f32.mrf.mxu0
      %v552 = vadd.f32 %v249, %v551
      %553 = vmatmul.f32.gmra.mxu0 %v322
      %v554 = vpop.f32.mrf.mxu0
      %v555 = vadd.f32 %v249, %v554
      %556 = vmatmul.f32.gmra.mxu0 %v325
      %v557 = vpop.f32.mrf.mxu0
      %v558 = vadd.f32 %v249, %v557
      %559 = vmatmul.f32.gmra.mxu0 %v328
      %v560 = vpop.f32.mrf.mxu0
      %v561 = vadd.f32 %v249, %v560
      %562 = vmatmul.f32.gmra.mxu0 %v331
      %v563 = vpop.f32.mrf.mxu0
      %v564 = vadd.f32 %v249, %v563
      %565 = vmatmul.f32.gmra.mxu0 %v334
      %v566 = vpop.f32.mrf.mxu0
      %v567 = vadd.f32 %v249, %v566
      %568 = vmatmul.f32.gmra.mxu0 %v337
      %v569 = vpop.f32.mrf.mxu0
      %v570 = vadd.f32 %v249, %v569
      %571 = vmatmul.f32.gmra.mxu0 %v340
      %v572 = vpop.f32.mrf.mxu0
      %v573 = vadd.f32 %v249, %v572
      %574 = vmatmul.f32.gmra.mxu0 %v343
      %v575 = vpop.f32.mrf.mxu0
      %v576 = vadd.f32 %v249, %v575
      %577 = vmatmul.f32.gmra.mxu0 %v346
      %v578 = vpop.f32.mrf.mxu0
      %v579 = vadd.f32 %v249, %v578
      %580 = vmatmul.f32.gmra.mxu0 %v349
      %v581 = vpop.f32.mrf.mxu0
      %v582 = vadd.f32 %v249, %v581
      %583 = vmatmul.f32.gmra.mxu0 %v352
      %v584 = vpop.f32.mrf.mxu0
      %v585 = vadd.f32 %v249, %v584
      %586 = vmatmul.f32.gmra.mxu0 %v355
      %v587 = vpop.f32.mrf.mxu0
      %v588 = vadd.f32 %v249, %v587
      %589 = vmatmul.f32.gmra.mxu0 %v358
      %v590 = vpop.f32.mrf.mxu0
      %v591 = vadd.f32 %v249, %v590
      %592 = vmatmul.f32.gmra.mxu0 %v361
      %v593 = vpop.f32.mrf.mxu0
      %v594 = vadd.f32 %v249, %v593
      %595 = vmatmul.f32.gmra.mxu0 %v364
      %v596 = vpop.f32.mrf.mxu0
      %v597 = vadd.f32 %v249, %v596
      %598 = vmatmul.f32.gmra.mxu0 %v367
      %v599 = vpop.f32.mrf.mxu0
      %v600 = vadd.f32 %v249, %v599
      %601 = vmatmul.f32.gmra.mxu0 %v370
      %v602 = vpop.f32.mrf.mxu0
      %v603 = vadd.f32 %v249, %v602
      %604 = vmatmul.f32.gmra.mxu0 %v373
      %v605 = vpop.f32.mrf.mxu0
      %v606 = vadd.f32 %v249, %v605
      %607 = vmatmul.f32.gmra.mxu0 %v376
      %v608 = vpop.f32.mrf.mxu0
      %v609 = vadd.f32 %v249, %v608
      %610 = vmatmul.f32.gmra.mxu0 %v379
      %v611 = vpop.f32.mrf.mxu0
      %v612 = vadd.f32 %v249, %v611
      %613 = vmatmul.f32.gmra.mxu0 %v382
      %v614 = vpop.f32.mrf.mxu0
      %v615 = vadd.f32 %v249, %v614
      %616 = vmatmul.f32.gmra.mxu0 %v385
      %v617 = vpop.f32.mrf.mxu0
      %v618 = vadd.f32 %v249, %v617
      %619 = vmatmul.f32.gmra.mxu0 %v388
      %v620 = vpop.f32.mrf.mxu0
      %v621 = vadd.f32 %v249, %v620
      %622 = vmatmul.f32.gmra.mxu0 %v391
      %v623 = vpop.f32.mrf.mxu0
      %v624 = vadd.f32 %v249, %v623
      %625 = vmatmul.f32.gmra.mxu0 %v394
      %v626 = vpop.f32.mrf.mxu0
      %v627 = vadd.f32 %v249, %v626
      %628 = vmatmul.f32.gmra.mxu0 %v397
      %v629 = vpop.f32.mrf.mxu0
      %v630 = vadd.f32 %v249, %v629
      %631 = vmatmul.f32.gmra.mxu0 %v400
      %v632 = vpop.f32.mrf.mxu0
      %v633 = vadd.f32 %v249, %v632
      %634 = vmatmul.f32.gmra.mxu0 %v403
      %v635 = vpop.f32.mrf.mxu0
      %v636 = vadd.f32 %v249, %v635
      %637 = vmatmul.f32.gmra.mxu0 %v406
      %v638 = vpop.f32.mrf.mxu0
      %v639 = vadd.f32 %v249, %v638
      %640 = vmatmul.f32.gmra.mxu0 %v409
      %v641 = vpop.f32.mrf.mxu0
      %v642 = vadd.f32 %v249, %v641
      %643 = vmatmul.f32.gmra.mxu0 %v412
      %v644 = vpop.f32.mrf.mxu0
      %v645 = vadd.f32 %v249, %v644
      %646 = vmatmul.f32.gmra.mxu0 %v415
      %v647 = vpop.f32.mrf.mxu0
      %v648 = vadd.f32 %v249, %v647
      %649 = vmatmul.f32.gmra.mxu0 %v418
      %v650 = vpop.f32.mrf.mxu0
      %v651 = vadd.f32 %v249, %v650
      %652 = vmatmul.f32.gmra.mxu0 %v421
      %v653 = vpop.f32.mrf.mxu0
      %v654 = vadd.f32 %v249, %v653
      %655 = vmatmul.f32.gmra.mxu0 %v424
      %v656 = vpop.f32.mrf.mxu0
      %v657 = vadd.f32 %v249, %v656
      %658 = vmatmul.f32.gmra.mxu0 %v427
      %v659 = vpop.f32.mrf.mxu0
      %v660 = vadd.f32 %v249, %v659
      %661 = vmatmul.f32.gmra.mxu0 %v430
      %v662 = vpop.f32.mrf.mxu0
      %v663 = vadd.f32 %v249, %v662
      %664 = vmatmul.f32.gmra.mxu0 %v433
      %v665 = vpop.f32.mrf.mxu0
      %v666 = vadd.f32 %v249, %v665
      %667 = vmatmul.f32.gmra.mxu0 %v436
      %v668 = vpop.f32.mrf.mxu0
      %v669 = vadd.f32 %v249, %v668
      %670 = vmatmul.f32.gmra.mxu0 %v439
      %v671 = vpop.f32.mrf.mxu0
      %v672 = vadd.f32 %v249, %v671
      %673 = vmatmul.f32.gmra.mxu0 %v442
      %v674 = vpop.f32.mrf.mxu0
      %v675 = vadd.f32 %v249, %v674
      %676 = vmatmul.f32.gmra.mxu0 %v445
      %v677 = vpop.f32.mrf.mxu0
      %v678 = vadd.f32 %v249, %v677
      %679 = vmatmul.f32.gmra.mxu0 %v448
      %v680 = vpop.f32.mrf.mxu0
      %v681 = vadd.f32 %v249, %v680
      %682 = vmatmul.f32.gmra.mxu0 %v451
      %v683 = vpop.f32.mrf.mxu0
      %v684 = vadd.f32 %v249, %v683
      %685 = vmatmul.f32.gmra.mxu0 %v454
      %v686 = vpop.f32.mrf.mxu0
      %v687 = vadd.f32 %v249, %v686
      %688 = vmatmul.f32.gmra.mxu0 %v457
      %v689 = vpop.f32.mrf.mxu0
      %v690 = vadd.f32 %v249, %v689
      %691 = vmatmul.f32.gmra.mxu0 %v460
      %v692 = vpop.f32.mrf.mxu0
      %v693 = vadd.f32 %v249, %v692
      %694 = vmatmul.f32.gmra.mxu0 %v463
      %v695 = vpop.f32.mrf.mxu0
      %v696 = vadd.f32 %v249, %v695
      %697 = vmatmul.f32.gmra.mxu0 %v466
      %v698 = vpop.f32.mrf.mxu0
      %v699 = vadd.f32 %v249, %v698
      %700 = vdwg.mxu0
      %v701 = vmax.f32 %v486, %v540
      %v702 = vmax.f32 %v489, %v543
      %v703 = vmax.f32 %v492, %v546
      %v704 = vmax.f32 %v495, %v549
      %v705 = vmax.f32 %v498, %v552
      %v706 = vmax.f32 %v501, %v555
      %v707 = vmax.f32 %v504, %v558
      %v708 = vmax.f32 %v507, %v561
      %v709 = vmax.f32 %v510, %v564
      %v710 = vmax.f32 %v513, %v567
      %v711 = vmax.f32 %v516, %v570
      %v712 = vmax.f32 %v519, %v573
      %v713 = vmax.f32 %v522, %v576
      %v714 = vmax.f32 %v525, %v579
      %v715 = vmax.f32 %v528, %v582
      %v716 = vmax.f32 %v531, %v585
      %v717 = vmax.f32 %v534, %v588
      %v718 = vmax.f32 %v537, %v591
      %v719 = vmax.f32 %v594, %v648
      %v720 = vmax.f32 %v597, %v651
      %v721 = vmax.f32 %v600, %v654
      %v722 = vmax.f32 %v603, %v657
      %v723 = vmax.f32 %v606, %v660
      %v724 = vmax.f32 %v609, %v663
      %v725 = vmax.f32 %v612, %v666
      %v726 = vmax.f32 %v615, %v669
      %v727 = vmax.f32 %v618, %v672
      %v728 = vmax.f32 %v621, %v675
      %v729 = vmax.f32 %v624, %v678
      %v730 = vmax.f32 %v627, %v681
      %v731 = vmax.f32 %v630, %v684
      %v732 = vmax.f32 %v633, %v687
      %v733 = vmax.f32 %v636, %v690
      %v734 = vmax.f32 %v639, %v693
      %v735 = vmax.f32 %v642, %v696
      %v736 = vmax.f32 %v645, %v699
      %v737 = vmax.f32 %v701, %v719
      %v738 = vmax.f32 %v702, %v720
      %v739 = vmax.f32 %v703, %v721
      %v740 = vmax.f32 %v704, %v722
      %v741 = vmax.f32 %v705, %v723
      %v742 = vmax.f32 %v706, %v724
      %v743 = vmax.f32 %v707, %v725
      %v744 = vmax.f32 %v708, %v726
      %v745 = vmax.f32 %v709, %v727
      %v746 = vmax.f32 %v710, %v728
      %v747 = vmax.f32 %v711, %v729
      %v748 = vmax.f32 %v712, %v730
      %v749 = vmax.f32 %v713, %v731
      %v750 = vmax.f32 %v714, %v732
      %v751 = vmax.f32 %v715, %v733
      %v752 = vmax.f32 %v716, %v734
      %v753 = vmax.f32 %v717, %v735
      %v754 = vmax.f32 %v718, %v736
      %v755 = vmax.f32 %v737, 0.0
      %v756 = vmax.f32 %v738, 0.0
      %v757 = vmax.f32 %v739, 0.0
      %v758 = vmax.f32 %v740, 0.0
      %v759 = vmax.f32 %v741, 0.0
      %v760 = vmax.f32 %v742, 0.0
      %v761 = vmax.f32 %v743, 0.0
      %v762 = vmax.f32 %v744, 0.0
      %v763 = vmax.f32 %v745, 0.0
      %v764 = vmax.f32 %v746, 0.0
      %v765 = vmax.f32 %v747, 0.0
      %v766 = vmax.f32 %v748, 0.0
      %v767 = vmax.f32 %v749, 0.0
      %v768 = vmax.f32 %v750, 0.0
      %v769 = vmax.f32 %v751, 0.0
      %v770 = vmax.f32 %v752, 0.0
      %v771 = vmax.f32 %v753, 0.0
      %v772 = vmax.f32 %v754, 0.0
      %773 = vst [vmem:[%s170] sm:$0xff] %v755
      %774 = vst [vmem:[%s170 + $0x8] sm:$0xff] %v756
      %775 = vst [vmem:[%s170 + $0x10] sm:$0xff] %v757
      %776 = vst [vmem:[%s170 + $0x18] sm:$0xff] %v758
      %777 = vst [vmem:[%s170 + $0x20] sm:$0xff] %v759
      %778 = vst [vmem:[%s170 + $0x28] sm:$0xff] %v760
      %779 = vst [vmem:[%s170 + $0x30] sm:$0xff] %v761
      %780 = vst [vmem:[%s170 + $0x38] sm:$0xff] %v762
      %781 = vst [vmem:[%s170 + $0x40] sm:$0xff] %v763
      %782 = vst [vmem:[%s170 + $0x48] sm:$0xff] %v764
      %783 = vst [vmem:[%s170 + $0x50] sm:$0xff] %v765
      %784 = vst [vmem:[%s170 + $0x58] sm:$0xff] %v766
      %785 = vst [vmem:[%s170 + $0x60] sm:$0xff] %v767
      %786 = vst [vmem:[%s170 + $0x68] sm:$0xff] %v768
      %787 = vst [vmem:[%s170 + $0x70] sm:$0xff] %v769
      %788 = vst [vmem:[%s170 + $0x78] sm:$0xff] %v770
      %789 = vst [vmem:[%s170 + $0x80] sm:$0xff] %v771
      %790 = vst [vmem:[%s170 + $0x88] sm:$0xff] %v772
      %p791 = scmp.lt.s32.totalorder %s14, 1
      %s792 = scalar_select %p791, %s14, 1
      %s793 = smul.addr %s792, 18
      %s794 = smul.addr %s793, 8
      %s795 = scalar_lea.vmem %s3, %s794
      // Predicated region
      $region33: #{cnn_forward.2} parent=31 // pred_check
        %p796 = pneg %p100
      $region34: #{cnn_forward.2} parent=31 // pred_check_branch
        %798 = sbr.rel (%p796) target = $region36
      $region35: #{cnn_forward.2} parent=31 // pred_region
        _
      $region36: #{cnn_forward.2} parent=31 // pred_fallthru
        _
    $region32: #{cnn_forward.2} parent=5 // pred_fallthru
      _
    %p799 = scmp.le.s32.totalorder 2, %s9
    // Predicated region
    $region37: #{cnn_forward.2} parent=5 // pred_check
      %p800 = pneg %p799
    $region38: #{cnn_forward.2} parent=5 // pred_check_branch
      %802 = sbr.rel (%p800) target = $region40
    $region39: #{cnn_forward.2} parent=5 // pred_region
      %s803 = ssub.s32 %s9, 2
      // Predicated region
      $region41: #{cnn_forward.2} parent=39 // pred_check
        %p804 = pneg %p106
      $region42: #{cnn_forward.2} parent=39 // pred_check_branch
        %806 = sbr.rel (%p804) target = $region44
      $region43: #{cnn_forward.2} parent=39 // pred_region
        %p807 = scmp.lt.s32.totalorder %s15, 1
        %s808 = scalar_select %p807, %s15, 1
        %s809 = smul.addr %s808, 18
        %s810 = smul.addr %s809, 8
        %s811 = scalar_lea.vmem %s3, %s810
      $region44: #{cnn_forward.2} parent=39 // pred_fallthru
        _
    $region40: #{cnn_forward.2} parent=5 // pred_fallthru
      _
  $region6: #{cnn_forward.2} parent=0 // loop_footer
    %s13 = sadd.s32 1, %s9
  $region7: #{cnn_forward.2} parent=0 // loop_footer_branch
    %8 = sbr.rel target = $region3
  $region8: #{cnn_forward.2} parent=0 // loop_exit
    _

// kernel: cnn_forward.3
$region0: #{cnn_forward.3}
  #allocation0 [shape = 'u32[]', space=smem, size = 0x4, offset = 0x4, fixed_abs, tag = 'smem constant byte address 0x4 - core index']
  #allocation1 [shape = 'u32[72,128]{1,0:T(1,128)}', space=vmem, size = 0x9000, scoped, tag = 'internal scratch']
  %s0 = inlined_call_operand.vmem [shape: f32[2,64,256], index: 0, kind: input, shape index: {}]
  %s1 = inlined_call_operand.vmem [shape: f32[256,128], index: 1, kind: input, shape index: {}]
  %s2 = inlined_call_operand.vmem [shape: f32[1,128], index: 2, kind: input, shape index: {}]
  %s3 = inlined_call_operand.vmem [shape: f32[128,2048], index: 3, kind: input, shape index: {}]
  %s4 = inlined_call_operand.vmem [shape: f32[16,2048], index: 4, kind: input, shape index: {}]
  %s5 = inlined_call_operand.vmem [shape: f32[1,128], index: 5, kind: input, shape index: {}]
  %s6 = inlined_call_operand.hbm [shape: f32[2,1,128], index: 6, kind: output, shape index: {}]
  %s7 = sld [smem:[#allocation0]]
  $region57: #{cnn_forward.3} parent=0
    _
  %s9 = ssub.s32 1, %s7
  %s10 = scalar_select 0, %s9, %s7
  $region1: #{cnn_forward.3} parent=0
    #allocation2 [shape = 'u8[1024]{0}', space=vmem, size = 0x400, scoped, tag = 'output window, operand 0']
    #allocation3 [shape = 's32[2]{0}', space=sflag, size = 0x8, scoped, tag = 'scoped memory for cnn_forward.3']
    %11 = vsyncpa [#allocation3], 0
    %s12 = scalar_lea.sflag [#allocation3], 1
    %13 = vsyncpa %s12, 0
    loop: start=0, step=1, limit=4
    $region2: #{cnn_forward.3} parent=1 // loop_pre_header
      _
    $region3: #{cnn_forward.3} parent=1 // loop_header
      %s15 = sphi 0, %s19
      %p16 = scmp.ge.s32.totalorder %s15, 4
      %s25 = sphi 0, %s27
      %s28 = sphi 0, %s25
      %s29 = sphi 0, %s28
      %s45 = sphi 0, %s29
      %s49 = sphi 0, %s49
      %s51 = sphi 0, %s49
      %s52 = sphi 0, %s51
      %s66 = sphi 0, %s52
      %s70 = sphi 0, %s70
      %s72 = sphi 0, %s70
      %s73 = sphi 0, %s72
      %s87 = sphi 0, %s73
      %s91 = sphi 0, %s91
      %s93 = sphi 0, %s91
      %s94 = sphi 0, %s93
      %s108 = sphi 0, %s94
      %s112 = sphi 0, %s112
      %s114 = sphi 0, %s112
      %s115 = sphi 0, %s114
      %s129 = sphi 0, %s115
      %s133 = sphi 0, %s133
      %s135 = sphi 0, %s133
      %s136 = sphi 0, %s135
      %s150 = sphi 0, %s136
      %s156 = sphi 0, %s158
      %s159 = sphi 0, %s156
      %s160 = sphi 0, %s159
      %s176 = sphi 0, %s160
    $region4: #{cnn_forward.3} parent=1 // loop_header_branch
      %18 = sbr.rel (%p16) target = $region8
    $region5: #{cnn_forward.3} parent=1 // loop_body
      %s20 = ssub.s32 %s15, 1
      %s21 = ssub.s32 %s15, 2
      %s22 = sadd.s32 %s15, 1
      %s23 = ssub.s32 %s15, %s22
      %p24 = scmp.eq.s32.totalorder %s23, 0
      %s26 = sadd.s32 %s25, 1
      %s27 = scalar_select %p24, %s25, %s26
      %p30 = pneg %p24
      %p31 = scmp.eq.s32.totalorder %s15, 1
      %p32 = por %p30, %p31
      %p33 = scmp.ne.s32.totalorder %s25, %s28
      %p34 = scmp.eq.s32.totalorder %s15, 0
      %p35 = por %p33, %p34
      %p36 = scmp.ne.s32.totalorder %s25, %s28
      %p37 = scmp.eq.s32.totalorder %s20, 1
      %p38 = por %p36, %p37
      %p39 = scmp.ne.s32.totalorder %s28, %s29
      %p40 = scmp.eq.s32.totalorder %s20, 0
      %p41 = por %p39, %p40
      %p42 = scmp.ne.s32.totalorder %s28, %s29
      %p43 = scmp.eq.s32.totalorder %s21, 1
      %p44 = por %p42, %p43
      %p46 = scmp.ne.s32.totalorder %s29, %s45
      %p47 = scmp.eq.s32.totalorder %s21, 0
      %p48 = por %p46, %p47
      %s50 = sadd.s32 %s49, 1
      %p53 = scmp.eq.s32.totalorder %s15, 1
      %p54 = scmp.ne.s32.totalorder %s49, %s51
      %p55 = scmp.eq.s32.totalorder %s15, 0
      %p56 = por %p54, %p55
      %p57 = scmp.ne.s32.totalorder %s49, %s51
      %p58 = scmp.eq.s32.totalorder %s20, 1
      %p59 = por %p57, %p58
      %p60 = scmp.ne.s32.totalorder %s51, %s52
      %p61 = scmp.eq.s32.totalorder %s20, 0
      %p62 = por %p60, %p61
      %p63 = scmp.ne.s32.totalorder %s51, %s52
      %p64 = scmp.eq.s32.totalorder %s21, 1
      %p65 = por %p63, %p64
      %p67 = scmp.ne.s32.totalorder %s52, %s66
      %p68 = scmp.eq.s32.totalorder %s21, 0
      %p69 = por %p67, %p68
      %s71 = sadd.s32 %s70, 1
      %p74 = scmp.eq.s32.totalorder %s15, 1
      %p75 = scmp.ne.s32.totalorder %s70, %s72
      %p76 = scmp.eq.s32.totalorder %s15, 0
      %p77 = por %p75, %p76
      %p78 = scmp.ne.s32.totalorder %s70, %s72
      %p79 = scmp.eq.s32.totalorder %s20, 1
      %p80 = por %p78, %p79
      %p81 = scmp.ne.s32.totalorder %s72, %s73
      %p82 = scmp.eq.s32.totalorder %s20, 0
      %p83 = por %p81, %p82
      %p84 = scmp.ne.s32.totalorder %s72, %s73
      %p85 = scmp.eq.s32.totalorder %s21, 1
      %p86 = por %p84, %p85
      %p88 = scmp.ne.s32.totalorder %s73, %s87
      %p89 = scmp.eq.s32.totalorder %s21, 0
      %p90 = por %p88, %p89
      %s92 = sadd.s32 %s91, 1
      %p95 = scmp.eq.s32.totalorder %s15, 1
      %p96 = scmp.ne.s32.totalorder %s91, %s93
      %p97 = scmp.eq.s32.totalorder %s15, 0
      %p98 = por %p96, %p97
      %p99 = scmp.ne.s32.totalorder %s91, %s93
      %p100 = scmp.eq.s32.totalorder %s20, 1
      %p101 = por %p99, %p100
      %p102 = scmp.ne.s32.totalorder %s93, %s94
      %p103 = scmp.eq.s32.totalorder %s20, 0
      %p104 = por %p102, %p103
      %p105 = scmp.ne.s32.totalorder %s93, %s94
      %p106 = scmp.eq.s32.totalorder %s21, 1
      %p107 = por %p105, %p106
      %p109 = scmp.ne.s32.totalorder %s94, %s108
      %p110 = scmp.eq.s32.totalorder %s21, 0
      %p111 = por %p109, %p110
      %s113 = sadd.s32 %s112, 1
      %p116 = scmp.eq.s32.totalorder %s15, 1
      %p117 = scmp.ne.s32.totalorder %s112, %s114
      %p118 = scmp.eq.s32.totalorder %s15, 0
      %p119 = por %p117, %p118
      %p120 = scmp.ne.s32.totalorder %s112, %s114
      %p121 = scmp.eq.s32.totalorder %s20, 1
      %p122 = por %p120, %p121
      %p123 = scmp.ne.s32.totalorder %s114, %s115
      %p124 = scmp.eq.s32.totalorder %s20, 0
      %p125 = por %p123, %p124
      %p126 = scmp.ne.s32.totalorder %s114, %s115
      %p127 = scmp.eq.s32.totalorder %s21, 1
      %p128 = por %p126, %p127
      %p130 = scmp.ne.s32.totalorder %s115, %s129
      %p131 = scmp.eq.s32.totalorder %s21, 0
      %p132 = por %p130, %p131
      %s134 = sadd.s32 %s133, 1
      %p137 = scmp.eq.s32.totalorder %s15, 1
      %p138 = scmp.ne.s32.totalorder %s133, %s135
      %p139 = scmp.eq.s32.totalorder %s15, 0
      %p140 = por %p138, %p139
      %p141 = scmp.ne.s32.totalorder %s133, %s135
      %p142 = scmp.eq.s32.totalorder %s20, 1
      %p143 = por %p141, %p142
      %p144 = scmp.ne.s32.totalorder %s135, %s136
      %p145 = scmp.eq.s32.totalorder %s20, 0
      %p146 = por %p144, %p145
      %p147 = scmp.ne.s32.totalorder %s135, %s136
      %p148 = scmp.eq.s32.totalorder %s21, 1
      %p149 = por %p147, %p148
      %p151 = scmp.ne.s32.totalorder %s136, %s150
      %p152 = scmp.eq.s32.totalorder %s21, 0
      %p153 = por %p151, %p152
      %s154 = ssub.s32 %s15, %s22
      %p155 = scmp.eq.s32.totalorder %s154, 0
      %s157 = sadd.s32 %s156, 1
      %s158 = scalar_select %p155, %s156, %s157
      %p161 = pneg %p155
      %p162 = scmp.eq.s32.totalorder %s15, 1
      %p163 = por %p161, %p162
      %p164 = scmp.ne.s32.totalorder %s156, %s159
      %p165 = scmp.eq.s32.totalorder %s15, 0
      %p166 = por %p164, %p165
      %p167 = scmp.ne.s32.totalorder %s156, %s159
      %p168 = scmp.eq.s32.totalorder %s20, 1
      %p169 = por %p167, %p168
      %p170 = scmp.ne.s32.totalorder %s159, %s160
      %p171 = scmp.eq.s32.totalorder %s20, 0
      %p172 = por %p170, %p171
      %p173 = scmp.ne.s32.totalorder %s159, %s160
      %p174 = scmp.eq.s32.totalorder %s21, 1
      %p175 = por %p173, %p174
      %p177 = scmp.ne.s32.totalorder %s160, %s176
      %p178 = scmp.eq.s32.totalorder %s21, 0
      %p179 = por %p177, %p178
      %p180 = scmp.le.s32.totalorder 1, %s15
      %p181 = scmp.lt.s32.totalorder %s15, 3
      %p182 = pnand %p180, %p181
      %p183 = pneg %p182
      // Predicated region
      $region9: #{cnn_forward.3} parent=5 // pred_check
        _
      $region10: #{cnn_forward.3} parent=5 // pred_check_branch
        %185 = sbr.rel (%p182) target = $region12
      $region11: #{cnn_forward.3} parent=5 // pred_region
        %s186 = ssub.s32 %s15, 1
        // Predicated region
        $region13: #{cnn_forward.3} parent=11 // pred_check
          %p187 = pneg %p62
        $region14: #{cnn_forward.3} parent=11 // pred_check_branch
          %189 = sbr.rel (%p187) target = $region16
        $region15: #{cnn_forward.3} parent=11 // pred_region
          _
        $region16: #{cnn_forward.3} parent=11 // pred_fallthru
          _
        // Predicated region
        $region17: #{cnn_forward.3} parent=11 // pred_check
          %p190 = pneg %p83
        $region18: #{cnn_forward.3} parent=11 // pred_check_branch
          %192 = sbr.rel (%p190) target = $region20
        $region19: #{cnn_forward.3} parent=11 // pred_region
          _
        $region20: #{cnn_forward.3} parent=11 // pred_fallthru
          _
        // Predicated region
        $region21: #{cnn_forward.3} parent=11 // pred_check
          %p193 = pneg %p104
        $region22: #{cnn_forward.3} parent=11 // pred_check_branch
          %195 = sbr.rel (%p193) target = $region24
        $region23: #{cnn_forward.3} parent=11 // pred_region
          _
        $region24: #{cnn_forward.3} parent=11 // pred_fallthru
          _
        // Predicated region
        $region25: #{cnn_forward.3} parent=11 // pred_check
          %p196 = pneg %p125
        $region26: #{cnn_forward.3} parent=11 // pred_check_branch
          %198 = sbr.rel (%p196) target = $region28
        $region27: #{cnn_forward.3} parent=11 // pred_region
          _
        $region28: #{cnn_forward.3} parent=11 // pred_fallthru
          _
        // Predicated region
        $region29: #{cnn_forward.3} parent=11 // pred_check
          %p199 = pneg %p146
        $region30: #{cnn_forward.3} parent=11 // pred_check_branch
          %201 = sbr.rel (%p199) target = $region32
        $region31: #{cnn_forward.3} parent=11 // pred_region
          _
        $region32: #{cnn_forward.3} parent=11 // pred_fallthru
          _
      $region12: #{cnn_forward.3} parent=5 // pred_fallthru
        _
      %p202 = scmp.lt.s32.totalorder %s15, 2
      // Predicated region
      $region33: #{cnn_forward.3} parent=5 // pred_check
        %p203 = pneg %p202
      $region34: #{cnn_forward.3} parent=5 // pred_check_branch
        %205 = sbr.rel (%p203) target = $region36
      $region35: #{cnn_forward.3} parent=5 // pred_region
        // Predicated region
        $region37: #{cnn_forward.3} parent=35 // pred_check
          %p206 = pneg %p35
        $region38: #{cnn_forward.3} parent=35 // pred_check_branch
          %208 = sbr.rel (%p206) target = $region40
        $region39: #{cnn_forward.3} parent=35 // pred_region
          %p209 = scmp.lt.s32.totalorder %s15, 1
          %s210 = scalar_select %p209, %s15, 1
          %s211 = smul.addr %s210, 16
          %s212 = smul.addr %s211, 8
          %s213 = scalar_lea.vmem %s0, %s212
        $region40: #{cnn_forward.3} parent=35 // pred_fallthru
          _
      $region36: #{cnn_forward.3} parent=5 // pred_fallthru
        _
      %p214 = scmp.le.s32.totalorder 1, %s15
      %p215 = scmp.lt.s32.totalorder %s15, 3
      %p216 = pnand %p214, %p215
      %p217 = pneg %p216
      // Predicated region
      $region41: #{cnn_forward.3} parent=5 // pred_check
        _
      $region42: #{cnn_forward.3} parent=5 // pred_check_branch
        %219 = sbr.rel (%p216) target = $region44
      $region43: #{cnn_forward.3} parent=5 // pred_region
        %s220 = ssub.s32 %s15, 1
        %p221 = scmp.lt.s32.totalorder %s20, 1
        %s222 = scalar_select %p221, %s20, 1
        %s223 = smul.addr %s222, 16
        %s224 = smul.addr %s223, 8
        %s225 = scalar_lea.vmem %s0, %s224
        %p226 = pneg %p41
        %p227 = pneg %p38
        %p228 = pneg %p62
        %p229 = pneg %p59
        %p230 = pneg %p83
        %p231 = pneg %p80
        %p232 = pneg %p104
        %p233 = pneg %p101
        %p234 = pneg %p125
        %p235 = pneg %p122
        %p236 = pneg %p146
        %p237 = pneg %p143
        %p238 = pneg %p172
        %p239 = pneg %p169
        %s240 = sand.u32 %s159, 1
        %s241 = scalar_lea.sflag [#allocation3], %s240
        %s242 = sand.u32 %s159, 1
        %s243 = scalar_lea.vmem [#allocation2], %s242
        %p244 = scmp.lt.s32.totalorder %s20, 1
        %s245 = scalar_select %p244, %s20, 1
        %s246 = smul.addr %s245, 16
        %s247 = smul.addr %s246, 8
        %s248 = scalar_lea.vmem %s0, %s247
        %v249 = vld [vmem:[%s248] sm:$0xff]
        %v250 = vld [vmem:[%s248 + $0x8] sm:$0xff]
        %v251 = vld [vmem:[%s248 + $0x10] sm:$0xff]
        %v252 = vld [vmem:[%s248 + $0x18] sm:$0xff]
        %v253 = vld [vmem:[%s248 + $0x20] sm:$0xff]
        %v254 = vld [vmem:[%s248 + $0x28] sm:$0xff]
        %v255 = vld [vmem:[%s248 + $0x30] sm:$0xff]
        %v256 = vld [vmem:[%s248 + $0x38] sm:$0xff]
        %v257 = vld [vmem:[%s248 + $0x40] sm:$0xff]
        %v258 = vld [vmem:[%s248 + $0x48] sm:$0xff]
        %v259 = vld [vmem:[%s248 + $0x50] sm:$0xff]
        %v260 = vld [vmem:[%s248 + $0x58] sm:$0xff]
        %v261 = vld [vmem:[%s248 + $0x60] sm:$0xff]
        %v262 = vld [vmem:[%s248 + $0x68] sm:$0xff]
        %v263 = vld [vmem:[%s248 + $0x70] sm:$0xff]
        %v264 = vld [vmem:[%s248 + $0x78] sm:$0xff]
        %v265 = vld [vmem:[%s1] sm:$0xff]
        %v266 = vld [vmem:[%s1 + $0x8] sm:$0xff]
        %v267 = vld [vmem:[%s1 + $0x10] sm:$0xff]
        %v268 = vld [vmem:[%s1 + $0x18] sm:$0xff]
        %v269 = vld [vmem:[%s1 + $0x20] sm:$0xff]
        %v270 = vld [vmem:[%s1 + $0x28] sm:$0xff]
        %v271 = vld [vmem:[%s1 + $0x30] sm:$0xff]
        %v272 = vld [vmem:[%s1 + $0x38] sm:$0xff]
        %v273 = vld [vmem:[%s1 + $0x40] sm:$0xff]
        %v274 = vld [vmem:[%s1 + $0x48] sm:$0xff]
        %v275 = vld [vmem:[%s1 + $0x50] sm:$0xff]
        %v276 = vld [vmem:[%s1 + $0x58] sm:$0xff]
        %v277 = vld [vmem:[%s1 + $0x60] sm:$0xff]
        %v278 = vld [vmem:[%s1 + $0x68] sm:$0xff]
        %v279 = vld [vmem:[%s1 + $0x70] sm:$0xff]
        %v280 = vld [vmem:[%s1 + $0x78] sm:$0xff]
        %v281 = vld [vmem:[%s1 + $0x80] sm:$0xff]
        %v282 = vld [vmem:[%s1 + $0x88] sm:$0xff]
        %v283 = vld [vmem:[%s1 + $0x90] sm:$0xff]
        %v284 = vld [vmem:[%s1 + $0x98] sm:$0xff]
        %v285 = vld [vmem:[%s1 + $0xa0] sm:$0xff]
        %v286 = vld [vmem:[%s1 + $0xa8] sm:$0xff]
        %v287 = vld [vmem:[%s1 + $0xb0] sm:$0xff]
        %v288 = vld [vmem:[%s1 + $0xb8] sm:$0xff]
        %v289 = vld [vmem:[%s1 + $0xc0] sm:$0xff]
        %v290 = vld [vmem:[%s1 + $0xc8] sm:$0xff]
        %v291 = vld [vmem:[%s1 + $0xd0] sm:$0xff]
        %v292 = vld [vmem:[%s1 + $0xd8] sm:$0xff]
        %v293 = vld [vmem:[%s1 + $0xe0] sm:$0xff]
        %v294 = vld [vmem:[%s1 + $0xe8] sm:$0xff]
        %v295 = vld [vmem:[%s1 + $0xf0] sm:$0xff]
        %v296 = vld [vmem:[%s1 + $0xf8] sm:$0xff]
        %v297 = vld [vmem:[%s2] sm:$0x1]
        %v299 = vperm.slane %v297, 0
        %301 = vmatpush.msra.mxu0 %v280
        %302 = vmatpush.msra.mxu0 %v279
        %303 = vmatpush.msra.mxu0 %v278
        %304 = vmatpush.msra.mxu0 %v277
        %305 = vmatpush.msra.mxu0 %v276
        %306 = vmatpush.msra.mxu0 %v275
        %307 = vmatpush.msra.mxu0 %v274
        %308 = vmatpush.msra.mxu0 %v273
        %309 = vmatpush.msra.mxu0 %v272
        %310 = vmatpush.msra.mxu0 %v271
        %311 = vmatpush.msra.mxu0 %v270
        %312 = vmatpush.msra.mxu0 %v269
        %313 = vmatpush.msra.mxu0 %v268
        %314 = vmatpush.msra.mxu0 %v267
        %315 = vmatpush.msra.mxu0 %v266
        %316 = vmatpush.msra.mxu0 %v265
        %317 = vmatmul.f32.gmra.mxu0 %v249
        %v318 = vpop.f32.mrf.mxu0
        %v319 = vadd.f32 %v299, %v318
        %320 = vmatmul.f32.gmra.mxu0 %v251
        %v321 = vpop.f32.mrf.mxu0
        %v322 = vadd.f32 %v299, %v321
        %323 = vmatmul.f32.gmra.mxu0 %v253
        %v324 = vpop.f32.mrf.mxu0
        %v325 = vadd.f32 %v299, %v324
        %326 = vmatmul.f32.gmra.mxu0 %v255
        %v327 = vpop.f32.mrf.mxu0
        %v328 = vadd.f32 %v299, %v327
        %329 = vmatmul.f32.gmra.mxu0 %v257
        %v330 = vpop.f32.mrf.mxu0
        %v331 = vadd.f32 %v299, %v330
        %332 = vmatmul.f32.gmra.mxu0 %v259
        %v333 = vpop.f32.mrf.mxu0
        %v334 = vadd.f32 %v299, %v333
        %335 = vmatmul.f32.gmra.mxu0 %v261
        %v336 = vpop.f32.mrf.mxu0
        %v337 = vadd.f32 %v299, %v336
        %338 = vmatmul.f32.gmra.mxu0 %v263
        %v339 = vpop.f32.mrf.mxu0
        %v340 = vadd.f32 %v299, %v339
        %341 = vdwg.mxu0
        %342 = vmatpush.msra.mxu0 %v296
        %343 = vmatpush.msra.mxu0 %v295
        %344 = vmatpush.msra.mxu0 %v294
        %345 = vmatpush.msra.mxu0 %v293
        %346 = vmatpush.msra.mxu0 %v292
        %347 = vmatpush.msra.mxu0 %v291
        %348 = vmatpush.msra.mxu0 %v290
        %349 = vmatpush.msra.mxu0 %v289
        %350 = vmatpush.msra.mxu0 %v288
        %351 = vmatpush.msra.mxu0 %v287
        %352 = vmatpush.msra.mxu0 %v286
        %353 = vmatpush.msra.mxu0 %v285
        %354 = vmatpush.msra.mxu0 %v284
        %355 = vmatpush.msra.mxu0 %v283
        %356 = vmatpush.msra.mxu0 %v282
        %357 = vmatpush.msra.mxu0 %v281
        %358 = vmatmul.f32.gmra.mxu0 %v250
        %v359 = vpop.f32.mrf.mxu0
        %v360 = vadd.f32 %v319, %v359
        %361 = vmatmul.f32.gmra.mxu0 %v252
        %v362 = vpop.f32.mrf.mxu0
        %v363 = vadd.f32 %v322, %v362
        %364 = vmatmul.f32.gmra.mxu0 %v254
        %v365 = vpop.f32.mrf.mxu0
        %v366 = vadd.f32 %v325, %v365
        %367 = vmatmul.f32.gmra.mxu0 %v256
        %v368 = vpop.f32.mrf.mxu0
        %v369 = vadd.f32 %v328, %v368
        %370 = vmatmul.f32.gmra.mxu0 %v258
        %v371 = vpop.f32.mrf.mxu0
        %v372 = vadd.f32 %v331, %v371
        %373 = vmatmul.f32.gmra.mxu0 %v260
        %v374 = vpop.f32.mrf.mxu0
        %v375 = vadd.f32 %v334, %v374
        %376 = vmatmul.f32.gmra.mxu0 %v262
        %v377 = vpop.f32.mrf.mxu0
        %v378 = vadd.f32 %v337, %v377
        %379 = vmatmul.f32.gmra.mxu0 %v264
        %v380 = vpop.f32.mrf.mxu0
        %v381 = vadd.f32 %v340, %v380
        %382 = vdwg.mxu0
        %v383 = vmax.f32 %v360, %v366
        %v384 = vmax.f32 %v363, %v369
        %v385 = vmax.f32 %v372, %v378
        %v386 = vmax.f32 %v375, %v381
        %v387 = vmax.f32 %v383, %v385
        %v388 = vmax.f32 %v384, %v386
        %v389 = vmax.f32 %v387, 0.0
        %v390 = vmax.f32 %v388, 0.0
        %v391 = vld [vmem:[%s3] sm:$0xff]
        %v392 = vld [vmem:[%s3 + $0x8] sm:$0xff]
        %v393 = vld [vmem:[%s3 + $0x10] sm:$0xff]
        %v394 = vld [vmem:[%s3 + $0x18] sm:$0xff]
        %v395 = vld [vmem:[%s3 + $0x20] sm:$0xff]
        %v396 = vld [vmem:[%s3 + $0x28] sm:$0xff]
        %v397 = vld [vmem:[%s3 + $0x30] sm:$0xff]
        %v398 = vld [vmem:[%s3 + $0x38] sm:$0xff]
        %v399 = vld [vmem:[%s3 + $0x40] sm:$0xff]
        %v400 = vld [vmem:[%s3 + $0x48] sm:$0xff]
        %v401 = vld [vmem:[%s3 + $0x50] sm:$0xff]
        %v402 = vld [vmem:[%s3 + $0x58] sm:$0xff]
        %v403 = vld [vmem:[%s3 + $0x60] sm:$0xff]
        %v404 = vld [vmem:[%s3 + $0x68] sm:$0xff]
        %v405 = vld [vmem:[%s3 + $0x70] sm:$0xff]
        %v406 = vld [vmem:[%s3 + $0x78] sm:$0xff]
        %v407 = vld [vmem:[%s3 + $0x80] sm:$0xff]
        %v408 = vld [vmem:[%s3 + $0x88] sm:$0xff]
        %v409 = vld [vmem:[%s3 + $0x90] sm:$0xff]
        %v410 = vld [vmem:[%s3 + $0x98] sm:$0xff]
        %v411 = vld [vmem:[%s3 + $0xa0] sm:$0xff]
        %v412 = vld [vmem:[%s3 + $0xa8] sm:$0xff]
        %v413 = vld [vmem:[%s3 + $0xb0] sm:$0xff]
        %v414 = vld [vmem:[%s3 + $0xb8] sm:$0xff]
        %v415 = vld [vmem:[%s3 + $0xc0] sm:$0xff]
        %v416 = vld [vmem:[%s3 + $0xc8] sm:$0xff]
        %v417 = vld [vmem:[%s3 + $0xd0] sm:$0xff]
        %v418 = vld [vmem:[%s3 + $0xd8] sm:$0xff]
        %v419 = vld [vmem:[%s3 + $0xe0] sm:$0xff]
        %v420 = vld [vmem:[%s3 + $0xe8] sm:$0xff]
        %v421 = vld [vmem:[%s3 + $0xf0] sm:$0xff]
        %v422 = vld [vmem:[%s3 + $0xf8] sm:$0xff]
        %v423 = vld [vmem:[%s3 + $0x100] sm:$0xff]
        %v424 = vld [vmem:[%s3 + $0x108] sm:$0xff]
        %v425 = vld [vmem:[%s3 + $0x110] sm:$0xff]
        %v426 = vld [vmem:[%s3 + $0x118] sm:$0xff]
        %v427 = vld [vmem:[%s3 + $0x120] sm:$0xff]
        %v428 = vld [vmem:[%s3 + $0x128] sm:$0xff]
        %v429 = vld [vmem:[%s3 + $0x130] sm:$0xff]
        %v430 = vld [vmem:[%s3 + $0x138] sm:$0xff]
        %v431 = vld [vmem:[%s3 + $0x140] sm:$0xff]
        %v432 = vld [vmem:[%s3 + $0x148] sm:$0xff]
        %v433 = vld [vmem:[%s3 + $0x150] sm:$0xff]
        %v434 = vld [vmem:[%s3 + $0x158] sm:$0xff]
        %v435 = vld [vmem:[%s3 + $0x160] sm:$0xff]
        %v436 = vld [vmem:[%s3 + $0x168] sm:$0xff]
        %v437 = vld [vmem:[%s3 + $0x170] sm:$0xff]
        %v438 = vld [vmem:[%s3 + $0x178] sm:$0xff]
        %v439 = vld [vmem:[%s3 + $0x180] sm:$0xff]
        %v440 = vld [vmem:[%s3 + $0x188] sm:$0xff]
        %v441 = vld [vmem:[%s3 + $0x190] sm:$0xff]
        %v442 = vld [vmem:[%s3 + $0x198] sm:$0xff]
        %v443 = vld [vmem:[%s3 + $0x1a0] sm:$0xff]
        %v444 = vld [vmem:[%s3 + $0x1a8] sm:$0xff]
        %v445 = vld [vmem:[%s3 + $0x1b0] sm:$0xff]
        %v446 = vld [vmem:[%s3 + $0x1b8] sm:$0xff]
        %v447 = vld [vmem:[%s3 + $0x1c0] sm:$0xff]
        %v448 = vld [vmem:[%s3 + $0x1c8] sm:$0xff]
        %v449 = vld [vmem:[%s3 + $0x1d0] sm:$0xff]
        %v450 = vld [vmem:[%s3 + $0x1d8] sm:$0xff]
        %v451 = vld [vmem:[%s3 + $0x1e0] sm:$0xff]
        %v452 = vld [vmem:[%s3 + $0x1e8] sm:$0xff]
        %v453 = vld [vmem:[%s3 + $0x1f0] sm:$0xff]
        %v454 = vld [vmem:[%s3 + $0x1f8] sm:$0xff]
        %v455 = vld [vmem:[%s3 + $0x200] sm:$0xff]
        %v456 = vld [vmem:[%s3 + $0x208] sm:$0xff]
        %v457 = vld [vmem:[%s3 + $0x210] sm:$0xff]
        %v458 = vld [vmem:[%s3 + $0x218] sm:$0xff]
        %v459 = vld [vmem:[%s3 + $0x220] sm:$0xff]
        %v460 = vld [vmem:[%s3 + $0x228] sm:$0xff]
        %v461 = vld [vmem:[%s3 + $0x230] sm:$0xff]
        %v462 = vld [vmem:[%s3 + $0x238] sm:$0xff]
        %v463 = vld [vmem:[%s3 + $0x240] sm:$0xff]
        %v464 = vld [vmem:[%s3 + $0x248] sm:$0xff]
        %v465 = vld [vmem:[%s3 + $0x250] sm:$0xff]
        %v466 = vld [vmem:[%s3 + $0x258] sm:$0xff]
        %v467 = vld [vmem:[%s3 + $0x260] sm:$0xff]
        %v468 = vld [vmem:[%s3 + $0x268] sm:$0xff]
        %v469 = vld [vmem:[%s3 + $0x270] sm:$0xff]
        %v470 = vld [vmem:[%s3 + $0x278] sm:$0xff]
        %v471 = vld [vmem:[%s3 + $0x280] sm:$0xff]
        %v472 = vld [vmem:[%s3 + $0x288] sm:$0xff]
        %v473 = vld [vmem:[%s3 + $0x290] sm:$0xff]
        %v474 = vld [vmem:[%s3 + $0x298] sm:$0xff]
        %v475 = vld [vmem:[%s3 + $0x2a0] sm:$0xff]
        %v476 = vld [vmem:[%s3 + $0x2a8] sm:$0xff]
        %v477 = vld [vmem:[%s3 + $0x2b0] sm:$0xff]
        %v478 = vld [vmem:[%s3 + $0x2b8] sm:$0xff]
        %v479 = vld [vmem:[%s3 + $0x2c0] sm:$0xff]
        %v480 = vld [vmem:[%s3 + $0x2c8] sm:$0xff]
        %v481 = vld [vmem:[%s3 + $0x2d0] sm:$0xff]
        %v482 = vld [vmem:[%s3 + $0x2d8] sm:$0xff]
        %v483 = vld [vmem:[%s3 + $0x2e0] sm:$0xff]
        %v484 = vld [vmem:[%s3 + $0x2e8] sm:$0xff]
        %v485 = vld [vmem:[%s3 + $0x2f0] sm:$0xff]
        %v486 = vld [vmem:[%s3 + $0x2f8] sm:$0xff]
        %v487 = vld [vmem:[%s3 + $0x300] sm:$0xff]
        %v488 = vld [vmem:[%s3 + $0x308] sm:$0xff]
        %v489 = vld [vmem:[%s3 + $0x310] sm:$0xff]
        %v490 = vld [vmem:[%s3 + $0x318] sm:$0xff]
        %v491 = vld [vmem:[%s3 + $0x320] sm:$0xff]
        %v492 = vld [vmem:[%s3 + $0x328] sm:$0xff]
        %v493 = vld [vmem:[%s3 + $0x330] sm:$0xff]
        %v494 = vld [vmem:[%s3 + $0x338] sm:$0xff]
        %v495 = vld [vmem:[%s3 + $0x340] sm:$0xff]
        %v496 = vld [vmem:[%s3 + $0x348] sm:$0xff]
        %v497 = vld [vmem:[%s3 + $0x350] sm:$0xff]
        %v498 = vld [vmem:[%s3 + $0x358] sm:$0xff]
        %v499 = vld [vmem:[%s3 + $0x360] sm:$0xff]
        %v500 = vld [vmem:[%s3 + $0x368] sm:$0xff]
        %v501 = vld [vmem:[%s3 + $0x370] sm:$0xff]
        %v502 = vld [vmem:[%s3 + $0x378] sm:$0xff]
        %v503 = vld [vmem:[%s3 + $0x380] sm:$0xff]
        %v504 = vld [vmem:[%s3 + $0x388] sm:$0xff]
        %v505 = vld [vmem:[%s3 + $0x390] sm:$0xff]
        %v506 = vld [vmem:[%s3 + $0x398] sm:$0xff]
        %v507 = vld [vmem:[%s3 + $0x3a0] sm:$0xff]
        %v508 = vld [vmem:[%s3 + $0x3a8] sm:$0xff]
        %v509 = vld [vmem:[%s3 + $0x3b0] sm:$0xff]
        %v510 = vld [vmem:[%s3 + $0x3b8] sm:$0xff]
        %v511 = vld [vmem:[%s3 + $0x3c0] sm:$0xff]
        %v512 = vld [vmem:[%s3 + $0x3c8] sm:$0xff]
        %v513 = vld [vmem:[%s3 + $0x3d0] sm:$0xff]
        %v514 = vld [vmem:[%s3 + $0x3d8] sm:$0xff]
        %v515 = vld [vmem:[%s3 + $0x3e0] sm:$0xff]
        %v516 = vld [vmem:[%s3 + $0x3e8] sm:$0xff]
        %v517 = vld [vmem:[%s3 + $0x3f0] sm:$0xff]
        %v518 = vld [vmem:[%s3 + $0x3f8] sm:$0xff]
        %v519 = vld [vmem:[%s3 + $0x400] sm:$0xff]
        %v520 = vld [vmem:[%s3 + $0x408] sm:$0xff]
        %v521 = vld [vmem:[%s3 + $0x410] sm:$0xff]
        %v522 = vld [vmem:[%s3 + $0x418] sm:$0xff]
        %v523 = vld [vmem:[%s3 + $0x420] sm:$0xff]
        %v524 = vld [vmem:[%s3 + $0x428] sm:$0xff]
        %v525 = vld [vmem:[%s3 + $0x430] sm:$0xff]
        %v526 = vld [vmem:[%s3 + $0x438] sm:$0xff]
        %v527 = vld [vmem:[%s3 + $0x440] sm:$0xff]
        %v528 = vld [vmem:[%s3 + $0x448] sm:$0xff]
        %v529 = vld [vmem:[%s3 + $0x450] sm:$0xff]
        %v530 = vld [vmem:[%s3 + $0x458] sm:$0xff]
        %v531 = vld [vmem:[%s3 + $0x460] sm:$0xff]
        %v532 = vld [vmem:[%s3 + $0x468] sm:$0xff]
        %v533 = vld [vmem:[%s3 + $0x470] sm:$0xff]
        %v534 = vld [vmem:[%s3 + $0x478] sm:$0xff]
        %v535 = vld [vmem:[%s3 + $0x480] sm:$0xff]
        %v536 = vld [vmem:[%s3 + $0x488] sm:$0xff]
        %v537 = vld [vmem:[%s3 + $0x490] sm:$0xff]
        %v538 = vld [vmem:[%s3 + $0x498] sm:$0xff]
        %v539 = vld [vmem:[%s3 + $0x4a0] sm:$0xff]
        %v540 = vld [vmem:[%s3 + $0x4a8] sm:$0xff]
        %v541 = vld [vmem:[%s3 + $0x4b0] sm:$0xff]
        %v542 = vld [vmem:[%s3 + $0x4b8] sm:$0xff]
        %v543 = vld [vmem:[%s3 + $0x4c0] sm:$0xff]
        %v544 = vld [vmem:[%s3 + $0x4c8] sm:$0xff]
        %v545 = vld [vmem:[%s3 + $0x4d0] sm:$0xff]
        %v546 = vld [vmem:[%s3 + $0x4d8] sm:$0xff]
        %v547 = vld [vmem:[%s3 + $0x4e0] sm:$0xff]
        %v548 = vld [vmem:[%s3 + $0x4e8] sm:$0xff]
        %v549 = vld [vmem:[%s3 + $0x4f0] sm:$0xff]
        %v550 = vld [vmem:[%s3 + $0x4f8] sm:$0xff]
        %v551 = vld [vmem:[%s3 + $0x500] sm:$0xff]
        %v552 = vld [vmem:[%s3 + $0x508] sm:$0xff]
        %v553 = vld [vmem:[%s3 + $0x510] sm:$0xff]
        %v554 = vld [vmem:[%s3 + $0x518] sm:$0xff]
        %v555 = vld [vmem:[%s3 + $0x520] sm:$0xff]
        %v556 = vld [vmem:[%s3 + $0x528] sm:$0xff]
        %v557 = vld [vmem:[%s3 + $0x530] sm:$0xff]
        %v558 = vld [vmem:[%s3 + $0x538] sm:$0xff]
        %v559 = vld [vmem:[%s3 + $0x540] sm:$0xff]
        %v560 = vld [vmem:[%s3 + $0x548] sm:$0xff]
        %v561 = vld [vmem:[%s3 + $0x550] sm:$0xff]
        %v562 = vld [vmem:[%s3 + $0x558] sm:$0xff]
        %v563 = vld [vmem:[%s3 + $0x560] sm:$0xff]
        %v564 = vld [vmem:[%s3 + $0x568] sm:$0xff]
        %v565 = vld [vmem:[%s3 + $0x570] sm:$0xff]
        %v566 = vld [vmem:[%s3 + $0x578] sm:$0xff]
        %v567 = vld [vmem:[%s3 + $0x580] sm:$0xff]
        %v568 = vld [vmem:[%s3 + $0x588] sm:$0xff]
        %v569 = vld [vmem:[%s3 + $0x590] sm:$0xff]
        %v570 = vld [vmem:[%s3 + $0x598] sm:$0xff]
        %v571 = vld [vmem:[%s3 + $0x5a0] sm:$0xff]
        %v572 = vld [vmem:[%s3 + $0x5a8] sm:$0xff]
        %v573 = vld [vmem:[%s3 + $0x5b0] sm:$0xff]
        %v574 = vld [vmem:[%s3 + $0x5b8] sm:$0xff]
        %v575 = vld [vmem:[%s3 + $0x5c0] sm:$0xff]
        %v576 = vld [vmem:[%s3 + $0x5c8] sm:$0xff]
        %v577 = vld [vmem:[%s3 + $0x5d0] sm:$0xff]
        %v578 = vld [vmem:[%s3 + $0x5d8] sm:$0xff]
        %v579 = vld [vmem:[%s3 + $0x5e0] sm:$0xff]
        %v580 = vld [vmem:[%s3 + $0x5e8] sm:$0xff]
        %v581 = vld [vmem:[%s3 + $0x5f0] sm:$0xff]
        %v582 = vld [vmem:[%s3 + $0x5f8] sm:$0xff]
        %v583 = vld [vmem:[%s3 + $0x600] sm:$0xff]
        %v584 = vld [vmem:[%s3 + $0x608] sm:$0xff]
        %v585 = vld [vmem:[%s3 + $0x610] sm:$0xff]
        %v586 = vld [vmem:[%s3 + $0x618] sm:$0xff]
        %v587 = vld [vmem:[%s3 + $0x620] sm:$0xff]
        %v588 = vld [vmem:[%s3 + $0x628] sm:$0xff]
        %v589 = vld [vmem:[%s3 + $0x630] sm:$0xff]
        %v590 = vld [vmem:[%s3 + $0x638] sm:$0xff]
        %v591 = vld [vmem:[%s3 + $0x640] sm:$0xff]
        %v592 = vld [vmem:[%s3 + $0x648] sm:$0xff]
        %v593 = vld [vmem:[%s3 + $0x650] sm:$0xff]
        %v594 = vld [vmem:[%s3 + $0x658] sm:$0xff]
        %v595 = vld [vmem:[%s3 + $0x660] sm:$0xff]
        %v596 = vld [vmem:[%s3 + $0x668] sm:$0xff]
        %v597 = vld [vmem:[%s3 + $0x670] sm:$0xff]
        %v598 = vld [vmem:[%s3 + $0x678] sm:$0xff]
        %v599 = vld [vmem:[%s3 + $0x680] sm:$0xff]
        %v600 = vld [vmem:[%s3 + $0x688] sm:$0xff]
        %v601 = vld [vmem:[%s3 + $0x690] sm:$0xff]
        %v602 = vld [vmem:[%s3 + $0x698] sm:$0xff]
        %v603 = vld [vmem:[%s3 + $0x6a0] sm:$0xff]
        %v604 = vld [vmem:[%s3 + $0x6a8] sm:$0xff]
        %v605 = vld [vmem:[%s3 + $0x6b0] sm:$0xff]
        %v606 = vld [vmem:[%s3 + $0x6b8] sm:$0xff]
        %v607 = vld [vmem:[%s3 + $0x6c0] sm:$0xff]
        %v608 = vld [vmem:[%s3 + $0x6c8] sm:$0xff]
        %v609 = vld [vmem:[%s3 + $0x6d0] sm:$0xff]
        %v610 = vld [vmem:[%s3 + $0x6d8] sm:$0xff]
        %v611 = vld [vmem:[%s3 + $0x6e0] sm:$0xff]
        %v612 = vld [vmem:[%s3 + $0x6e8] sm:$0xff]
        %v613 = vld [vmem:[%s3 + $0x6f0] sm:$0xff]
        %v614 = vld [vmem:[%s3 + $0x6f8] sm:$0xff]
        %v615 = vld [vmem:[%s3 + $0x700] sm:$0xff]
        %v616 = vld [vmem:[%s3 + $0x708] sm:$0xff]
        %v617 = vld [vmem:[%s3 + $0x710] sm:$0xff]
        %v618 = vld [vmem:[%s3 + $0x718] sm:$0xff]
        %v619 = vld [vmem:[%s3 + $0x720] sm:$0xff]
        %v620 = vld [vmem:[%s3 + $0x728] sm:$0xff]
        %v621 = vld [vmem:[%s3 + $0x730] sm:$0xff]
        %v622 = vld [vmem:[%s3 + $0x738] sm:$0xff]
        %v623 = vld [vmem:[%s3 + $0x740] sm:$0xff]
        %v624 = vld [vmem:[%s3 + $0x748] sm:$0xff]
        %v625 = vld [vmem:[%s3 + $0x750] sm:$0xff]
        %v626 = vld [vmem:[%s3 + $0x758] sm:$0xff]
        %v627 = vld [vmem:[%s3 + $0x760] sm:$0xff]
        %v628 = vld [vmem:[%s3 + $0x768] sm:$0xff]
        %v629 = vld [vmem:[%s3 + $0x770] sm:$0xff]
        %v630 = vld [vmem:[%s3 + $0x778] sm:$0xff]
        %v631 = vld [vmem:[%s3 + $0x780] sm:$0xff]
        %v632 = vld [vmem:[%s3 + $0x788] sm:$0xff]
        %v633 = vld [vmem:[%s3 + $0x790] sm:$0xff]
        %v634 = vld [vmem:[%s3 + $0x798] sm:$0xff]
        %v635 = vld [vmem:[%s3 + $0x7a0] sm:$0xff]
        %v636 = vld [vmem:[%s3 + $0x7a8] sm:$0xff]
        %v637 = vld [vmem:[%s3 + $0x7b0] sm:$0xff]
        %v638 = vld [vmem:[%s3 + $0x7b8] sm:$0xff]
        %v639 = vld [vmem:[%s3 + $0x7c0] sm:$0xff]
        %v640 = vld [vmem:[%s3 + $0x7c8] sm:$0xff]
        %v641 = vld [vmem:[%s3 + $0x7d0] sm:$0xff]
        %v642 = vld [vmem:[%s3 + $0x7d8] sm:$0xff]
        %v643 = vld [vmem:[%s3 + $0x7e0] sm:$0xff]
        %v644 = vld [vmem:[%s3 + $0x7e8] sm:$0xff]
        %v645 = vld [vmem:[%s3 + $0x7f0] sm:$0xff]
        %v646 = vld [vmem:[%s3 + $0x7f8] sm:$0xff]
        %647 = vmatpush.msra.mxu0 %v631
        %648 = vmatpush.msra.mxu0 %v615
        %649 = vmatpush.msra.mxu0 %v599
        %650 = vmatpush.msra.mxu0 %v583
        %651 = vmatpush.msra.mxu0 %v567
        %652 = vmatpush.msra.mxu0 %v551
        %653 = vmatpush.msra.mxu0 %v535
        %654 = vmatpush.msra.mxu0 %v519
        %655 = vmatpush.msra.mxu0 %v503
        %656 = vmatpush.msra.mxu0 %v487
        %657 = vmatpush.msra.mxu0 %v471
        %658 = vmatpush.msra.mxu0 %v455
        %659 = vmatpush.msra.mxu0 %v439
        %660 = vmatpush.msra.mxu0 %v423
        %661 = vmatpush.msra.mxu0 %v407
        %662 = vmatpush.msra.mxu0 %v391
        %663 = vmatmul.f32.gmra.mxu0 %v389
        %v664 = vpop.f32.mrf.mxu0
        %v665 = vadd.f32 0.0, %v664
        %666 = vmatmul.f32.gmra.mxu0 %v390
        %v667 = vpop.f32.mrf.mxu0
        %v668 = vadd.f32 0.0, %v667
        %669 = vdwg.mxu0
        %670 = vmatpush.msra.mxu0 %v632
        %671 = vmatpush.msra.mxu0 %v616
        %672 = vmatpush.msra.mxu0 %v600
        %673 = vmatpush.msra.mxu0 %v584
        %674 = vmatpush.msra.mxu0 %v568
        %675 = vmatpush.msra.mxu0 %v552
        %676 = vmatpush.msra.mxu0 %v536
        %677 = vmatpush.msra.mxu0 %v520
        %678 = vmatpush.msra.mxu0 %v504
        %679 = vmatpush.msra.mxu0 %v488
        %680 = vmatpush.msra.mxu0 %v472
        %681 = vmatpush.msra.mxu0 %v456
        %682 = vmatpush.msra.mxu0 %v440
        %683 = vmatpush.msra.mxu0 %v424
        %684 = vmatpush.msra.mxu0 %v408
        %685 = vmatpush.msra.mxu0 %v392
        %686 = vmatmul.f32.gmra.mxu0 %v389
        %v687 = vpop.f32.mrf.mxu0
        %v688 = vadd.f32 0.0, %v687
        %689 = vmatmul.f32.gmra.mxu0 %v390
        %v690 = vpop.f32.mrf.mxu0
        %v691 = vadd.f32 0.0, %v690
        %692 = vdwg.mxu0
        %693 = vmatpush.msra.mxu0 %v633
        %694 = vmatpush.msra.mxu0 %v617
        %695 = vmatpush.msra.mxu0 %v601
        %696 = vmatpush.msra.mxu0 %v585
        %697 = vmatpush.msra.mxu0 %v569
        %698 = vmatpush.msra.mxu0 %v553
        %699 = vmatpush.msra.mxu0 %v537
        %700 = vmatpush.msra.mxu0 %v521
        %701 = vmatpush.msra.mxu0 %v505
        %702 = vmatpush.msra.mxu0 %v489
        %703 = vmatpush.msra.mxu0 %v473
        %704 = vmatpush.msra.mxu0 %v457
        %705 = vmatpush.msra.mxu0 %v441
        %706 = vmatpush.msra.mxu0 %v425
        %707 = vmatpush.msra.mxu0 %v409
        %708 = vmatpush.msra.mxu0 %v393
        %709 = vmatmul.f32.gmra.mxu0 %v389
        %v710 = vpop.f32.mrf.mxu0
        %v711 = vadd.f32 0.0, %v710
        %712 = vmatmul.f32.gmra.mxu0 %v390
        %v713 = vpop.f32.mrf.mxu0
        %v714 = vadd.f32 0.0, %v713
        %715 = vdwg.mxu0
        %716 = vmatpush.msra.mxu0 %v634
        %717 = vmatpush.msra.mxu0 %v618
        %718 = vmatpush.msra.mxu0 %v602
        %719 = vmatpush.msra.mxu0 %v586
        %720 = vmatpush.msra.mxu0 %v570
        %721 = vmatpush.msra.mxu0 %v554
        %722 = vmatpush.msra.mxu0 %v538
        %723 = vmatpush.msra.mxu0 %v522
        %724 = vmatpush.msra.mxu0 %v506
        %725 = vmatpush.msra.mxu0 %v490
        %726 = vmatpush.msra.mxu0 %v474
        %727 = vmatpush.msra.mxu0 %v458
        %728 = vmatpush.msra.mxu0 %v442
        %729 = vmatpush.msra.mxu0 %v426
        %730 = vmatpush.msra.mxu0 %v410
        %731 = vmatpush.msra.mxu0 %v394
        %732 = vmatmul.f32.gmra.mxu0 %v389
        %v733 = vpop.f32.mrf.mxu0
        %v734 = vadd.f32 0.0, %v733
        %735 = vmatmul.f32.gmra.mxu0 %v390
        %v736 = vpop.f32.mrf.mxu0
        %v737 = vadd.f32 0.0, %v736
        %738 = vdwg.mxu0
        %739 = vmatpush.msra.mxu0 %v635
        %740 = vmatpush.msra.mxu0 %v619
        %741 = vmatpush.msra.mxu0 %v603
        %742 = vmatpush.msra.mxu0 %v587
        %743 = vmatpush.msra.mxu0 %v571
        %744 = vmatpush.msra.mxu0 %v555
        %745 = vmatpush.msra.mxu0 %v539
        %746 = vmatpush.msra.mxu0 %v523
        %747 = vmatpush.msra.mxu0 %v507
        %748 = vmatpush.msra.mxu0 %v491
        %749 = vmatpush.msra.mxu0 %v475
        %750 = vmatpush.msra.mxu0 %v459
        %751 = vmatpush.msra.mxu0 %v443
        %752 = vmatpush.msra.mxu0 %v427
        %753 = vmatpush.msra.mxu0 %v411
        %754 = vmatpush.msra.mxu0 %v395
        %755 = vmatmul.f32.gmra.mxu0 %v389
        %v756 = vpop.f32.mrf.mxu0
        %v757 = vadd.f32 0.0, %v756
        %758 = vmatmul.f32.gmra.mxu0 %v390
        %v759 = vpop.f32.mrf.mxu0
        %v760 = vadd.f32 0.0, %v759
        %761 = vdwg.mxu0
        %762 = vmatpush.msra.mxu0 %v636
        %763 = vmatpush.msra.mxu0 %v620
        %764 = vmatpush.msra.mxu0 %v604
        %765 = vmatpush.msra.mxu0 %v588
        %766 = vmatpush.msra.mxu0 %v572
        %767 = vmatpush.msra.mxu0 %v556
        %768 = vmatpush.msra.mxu0 %v540
        %769 = vmatpush.msra.mxu0 %v524
        %770 = vmatpush.msra.mxu0 %v508
        %771 = vmatpush.msra.mxu0 %v492
        %772 = vmatpush.msra.mxu0 %v476
        %773 = vmatpush.msra.mxu0 %v460
        %774 = vmatpush.msra.mxu0 %v444
        %775 = vmatpush.msra.mxu0 %v428
        %776 = vmatpush.msra.mxu0 %v412
        %777 = vmatpush.msra.mxu0 %v396
        %778 = vmatmul.f32.gmra.mxu0 %v389
        %v779 = vpop.f32.mrf.mxu0
        %v780 = vadd.f32 0.0, %v779
        %781 = vmatmul.f32.gmra.mxu0 %v390
        %v782 = vpop.f32.mrf.mxu0
        %v783 = vadd.f32 0.0, %v782
        %784 = vdwg.mxu0
        %785 = vmatpush.msra.mxu0 %v637
        %786 = vmatpush.msra.mxu0 %v621
        %787 = vmatpush.msra.mxu0 %v605
        %788 = vmatpush.msra.mxu0 %v589
        %789 = vmatpush.msra.mxu0 %v573
        %790 = vmatpush.msra.mxu0 %v557
        %791 = vmatpush.msra.mxu0 %v541
        %792 = vmatpush.msra.mxu0 %v525
        %793 = vmatpush.msra.mxu0 %v509
        %794 = vmatpush.msra.mxu0 %v493
        %795 = vmatpush.msra.mxu0 %v477
        %796 = vmatpush.msra.mxu0 %v461
        %797 = vmatpush.msra.mxu0 %v445
        %798 = vmatpush.msra.mxu0 %v429
        %799 = vmatpush.msra.mxu0 %v413
        %800 = vmatpush.msra.mxu0 %v397
        %801 = vmatmul.f32.gmra.mxu0 %v389
        %v802 = vpop.f32.mrf.mxu0
        %v803 = vadd.f32 0.0, %v802
        %804 = vmatmul.f32.gmra.mxu0 %v390
        %v805 = vpop.f32.mrf.mxu0
        %v806 = vadd.f32 0.0, %v805
        %807 = vdwg.mxu0
        %808 = vmatpush.msra.mxu0 %v638
        %809 = vmatpush.msra.mxu0 %v622
        %810 = vmatpush.msra.mxu0 %v606
        %811 = vmatpush.msra.mxu0 %v590
        %812 = vmatpush.msra.mxu0 %v574
        %813 = vmatpush.msra.mxu0 %v558
        %814 = vmatpush.msra.mxu0 %v542
        %815 = vmatpush.msra.mxu0 %v526
        %816 = vmatpush.msra.mxu0 %v510
        %817 = vmatpush.msra.mxu0 %v494
        %818 = vmatpush.msra.mxu0 %v478
        %819 = vmatpush.msra.mxu0 %v462
        %820 = vmatpush.msra.mxu0 %v446
        %821 = vmatpush.msra.mxu0 %v430
        %822 = vmatpush.msra.mxu0 %v414
        %823 = vmatpush.msra.mxu0 %v398
        %824 = vmatmul.f32.gmra.mxu0 %v389
        %v825 = vpop.f32.mrf.mxu0
        %v826 = vadd.f32 0.0, %v825
        %827 = vmatmul.f32.gmra.mxu0 %v390
        %v828 = vpop.f32.mrf.mxu0
        %v829 = vadd.f32 0.0, %v828
        %830 = vdwg.mxu0
        %831 = vmatpush.msra.mxu0 %v639
        %832 = vmatpush.msra.mxu0 %v623
        %833 = vmatpush.msra.mxu0 %v607
        %834 = vmatpush.msra.mxu0 %v591
        %835 = vmatpush.msra.mxu0 %v575
        %836 = vmatpush.msra.mxu0 %v559
        %837 = vmatpush.msra.mxu0 %v543
        %838 = vmatpush.msra.mxu0 %v527
        %839 = vmatpush.msra.mxu0 %v511
        %840 = vmatpush.msra.mxu0 %v495
        %841 = vmatpush.msra.mxu0 %v479
        %842 = vmatpush.msra.mxu0 %v463
        %843 = vmatpush.msra.mxu0 %v447
        %844 = vmatpush.msra.mxu0 %v431
        %845 = vmatpush.msra.mxu0 %v415
        %846 = vmatpush.msra.mxu0 %v399
        %847 = vmatmul.f32.gmra.mxu0 %v389
        %v848 = vpop.f32.mrf.mxu0
        %v849 = vadd.f32 0.0, %v848
        %850 = vmatmul.f32.gmra.mxu0 %v390
        %v851 = vpop.f32.mrf.mxu0
        %v852 = vadd.f32 0.0, %v851
        %853 = vdwg.mxu0
        %854 = vmatpush.msra.mxu0 %v640
        %855 = vmatpush.msra.mxu0 %v624
        %856 = vmatpush.msra.mxu0 %v608
        %857 = vmatpush.msra.mxu0 %v592
        %858 = vmatpush.msra.mxu0 %v576
        %859 = vmatpush.msra.mxu0 %v560
        %860 = vmatpush.msra.mxu0 %v544
        %861 = vmatpush.msra.mxu0 %v528
        %862 = vmatpush.msra.mxu0 %v512
        %863 = vmatpush.msra.mxu0 %v496
        %864 = vmatpush.msra.mxu0 %v480
        %865 = vmatpush.msra.mxu0 %v464
        %866 = vmatpush.msra.mxu0 %v448
        %867 = vmatpush.msra.mxu0 %v432
        %868 = vmatpush.msra.mxu0 %v416
        %869 = vmatpush.msra.mxu0 %v400
        %870 = vmatmul.f32.gmra.mxu0 %v389
        %v871 = vpop.f32.mrf.mxu0
        %v872 = vadd.f32 0.0, %v871
        %873 = vmatmul.f32.gmra.mxu0 %v390
        %v874 = vpop.f32.mrf.mxu0
        %v875 = vadd.f32 0.0, %v874
        %876 = vdwg.mxu0
        %877 = vmatpush.msra.mxu0 %v641
        %878 = vmatpush.msra.mxu0 %v625
        %879 = vmatpush.msra.mxu0 %v609
        %880 = vmatpush.msra.mxu0 %v593
        %881 = vmatpush.msra.mxu0 %v577
        %882 = vmatpush.msra.mxu0 %v561
        %883 = vmatpush.msra.mxu0 %v545
        %884 = vmatpush.msra.mxu0 %v529
        %885 = vmatpush.msra.mxu0 %v513
        %886 = vmatpush.msra.mxu0 %v497
        %887 = vmatpush.msra.mxu0 %v481
        %888 = vmatpush.msra.mxu0 %v465
        %889 = vmatpush.msra.mxu0 %v449
        %890 = vmatpush.msra.mxu0 %v433
        %891 = vmatpush.msra.mxu0 %v417
        %892 = vmatpush.msra.mxu0 %v401
        %893 = vmatmul.f32.gmra.mxu0 %v389
        %v894 = vpop.f32.mrf.mxu0
        %v895 = vadd.f32 0.0, %v894
        %896 = vmatmul.f32.gmra.mxu0 %v390
        %v897 = vpop.f32.mrf.mxu0
        %v898 = vadd.f32 0.0, %v897
        %899 = vdwg.mxu0
        %900 = vmatpush.msra.mxu0 %v642
        %901 = vmatpush.msra.mxu0 %v626
        %902 = vmatpush.msra.mxu0 %v610
        %903 = vmatpush.msra.mxu0 %v594
        %904 = vmatpush.msra.mxu0 %v578
        %905 = vmatpush.msra.mxu0 %v562
        %906 = vmatpush.msra.mxu0 %v546
        %907 = vmatpush.msra.mxu0 %v530
        %908 = vmatpush.msra.mxu0 %v514
        %909 = vmatpush.msra.mxu0 %v498
        %910 = vmatpush.msra.mxu0 %v482
        %911 = vmatpush.msra.mxu0 %v466
        %912 = vmatpush.msra.mxu0 %v450
        %913 = vmatpush.msra.mxu0 %v434
        %914 = vmatpush.msra.mxu0 %v418
        %915 = vmatpush.msra.mxu0 %v402
        %916 = vmatmul.f32.gmra.mxu0 %v389
        %v917 = vpop.f32.mrf.mxu0
        %v918 = vadd.f32 0.0, %v917
        %919 = vmatmul.f32.gmra.mxu0 %v390
        %v920 = vpop.f32.mrf.mxu0
        %v921 = vadd.f32 0.0, %v920
        %922 = vdwg.mxu0
        %923 = vmatpush.msra.mxu0 %v643
        %924 = vmatpush.msra.mxu0 %v627
        %925 = vmatpush.msra.mxu0 %v611
        %926 = vmatpush.msra.mxu0 %v595
        %927 = vmatpush.msra.mxu0 %v579
        %928 = vmatpush.msra.mxu0 %v563
        %929 = vmatpush.msra.mxu0 %v547
        %930 = vmatpush.msra.mxu0 %v531
        %931 = vmatpush.msra.mxu0 %v515
        %932 = vmatpush.msra.mxu0 %v499
        %933 = vmatpush.msra.mxu0 %v483
        %934 = vmatpush.msra.mxu0 %v467
        %935 = vmatpush.msra.mxu0 %v451
        %936 = vmatpush.msra.mxu0 %v435
        %937 = vmatpush.msra.mxu0 %v419
        %938 = vmatpush.msra.mxu0 %v403
        %939 = vmatmul.f32.gmra.mxu0 %v389
        %v940 = vpop.f32.mrf.mxu0
        %v941 = vadd.f32 0.0, %v940
        %942 = vmatmul.f32.gmra.mxu0 %v390
        %v943 = vpop.f32.mrf.mxu0
        %v944 = vadd.f32 0.0, %v943
        %945 = vdwg.mxu0
        %946 = vmatpush.msra.mxu0 %v644
        %947 = vmatpush.msra.mxu0 %v628
        %948 = vmatpush.msra.mxu0 %v612
        %949 = vmatpush.msra.mxu0 %v596
        %950 = vmatpush.msra.mxu0 %v580
        %951 = vmatpush.msra.mxu0 %v564
        %952 = vmatpush.msra.mxu0 %v548
        %953 = vmatpush.msra.mxu0 %v532
        %954 = vmatpush.msra.mxu0 %v516
        %955 = vmatpush.msra.mxu0 %v500
        %956 = vmatpush.msra.mxu0 %v484
        %957 = vmatpush.msra.mxu0 %v468
        %958 = vmatpush.msra.mxu0 %v452
        %959 = vmatpush.msra.mxu0 %v436
        %960 = vmatpush.msra.mxu0 %v420
        %961 = vmatpush.msra.mxu0 %v404
        %962 = vmatmul.f32.gmra.mxu0 %v389
        %v963 = vpop.f32.mrf.mxu0
        %v964 = vadd.f32 0.0, %v963
        %965 = vmatmul.f32.gmra.mxu0 %v390
        %v966 = vpop.f32.mrf.mxu0
        %v967 = vadd.f32 0.0, %v966
        %968 = vdwg.mxu0
        %969 = vmatpush.msra.mxu0 %v645
        %970 = vmatpush.msra.mxu0 %v629
        %971 = vmatpush.msra.mxu0 %v613
        %972 = vmatpush.msra.mxu0 %v597
        %973 = vmatpush.msra.mxu0 %v581
        %974 = vmatpush.msra.mxu0 %v565
        %975 = vmatpush.msra.mxu0 %v549
        %976 = vmatpush.msra.mxu0 %v533
        %977 = vmatpush.msra.mxu0 %v517
        %978 = vmatpush.msra.mxu0 %v501
        %979 = vmatpush.msra.mxu0 %v485
        %980 = vmatpush.msra.mxu0 %v469
        %981 = vmatpush.msra.mxu0 %v453
        %982 = vmatpush.msra.mxu0 %v437
        %983 = vmatpush.msra.mxu0 %v421
        %984 = vmatpush.msra.mxu0 %v405
        %985 = vmatmul.f32.gmra.mxu0 %v389
        %v986 = vpop.f32.mrf.mxu0
        %v987 = vadd.f32 0.0, %v986
        %988 = vmatmul.f32.gmra.mxu0 %v390
        %v989 = vpop.f32.mrf.mxu0
        %v990 = vadd.f32 0.0, %v989
        %991 = vdwg.mxu0
        %992 = vmatpush.msra.mxu0 %v646
        %993 = vmatpush.msra.mxu0 %v630
        %994 = vmatpush.msra.mxu0 %v614
        %995 = vmatpush.msra.mxu0 %v598
        %996 = vmatpush.msra.mxu0 %v582
        %997 = vmatpush.msra.mxu0 %v566
        %998 = vmatpush.msra.mxu0 %v550
        %999 = vmatpush.msra.mxu0 %v534
        %1000 = vmatpush.msra.mxu0 %v518
        %1001 = vmatpush.msra.mxu0 %v502
        %1002 = vmatpush.msra.mxu0 %v486
        %1003 = vmatpush.msra.mxu0 %v470
        %1004 = vmatpush.msra.mxu0 %v454
        %1005 = vmatpush.msra.mxu0 %v438
        %1006 = vmatpush.msra.mxu0 %v422
        %1007 = vmatpush.msra.mxu0 %v406
        %1008 = vmatmul.f32.gmra.mxu0 %v389
        %v1009 = vpop.f32.mrf.mxu0
        %v1010 = vadd.f32 0.0, %v1009
        %1011 = vmatmul.f32.gmra.mxu0 %v390
        %v1012 = vpop.f32.mrf.mxu0
        %v1013 = vadd.f32 0.0, %v1012
        %1014 = vdwg.mxu0
        %v1015 = vld [vmem:[%s4] sm:$0xff]
        %v1016 = vld [vmem:[%s4 + $0x8] sm:$0xff]
        %v1017 = vld [vmem:[%s4 + $0x10] sm:$0xff]
        %v1018 = vld [vmem:[%s4 + $0x18] sm:$0xff]
        %v1019 = vld [vmem:[%s4 + $0x20] sm:$0xff]
        %v1020 = vld [vmem:[%s4 + $0x28] sm:$0xff]
        %v1021 = vld [vmem:[%s4 + $0x30] sm:$0xff]
        %v1022 = vld [vmem:[%s4 + $0x38] sm:$0xff]
        %v1023 = vld [vmem:[%s4 + $0x40] sm:$0xff]
        %v1024 = vld [vmem:[%s4 + $0x48] sm:$0xff]
        %v1025 = vld [vmem:[%s4 + $0x50] sm:$0xff]
        %v1026 = vld [vmem:[%s4 + $0x58] sm:$0xff]
        %v1027 = vld [vmem:[%s4 + $0x60] sm:$0xff]
        %v1028 = vld [vmem:[%s4 + $0x68] sm:$0xff]
        %v1029 = vld [vmem:[%s4 + $0x70] sm:$0xff]
        %v1030 = vld [vmem:[%s4 + $0x78] sm:$0xff]
        %v1031 = vld [vmem:[%s4 + $0x80] sm:$0xff]
        %v1032 = vld [vmem:[%s4 + $0x88] sm:$0xff]
        %v1033 = vld [vmem:[%s4 + $0x90] sm:$0xff]
        %v1034 = vld [vmem:[%s4 + $0x98] sm:$0xff]
        %v1035 = vld [vmem:[%s4 + $0xa0] sm:$0xff]
        %v1036 = vld [vmem:[%s4 + $0xa8] sm:$0xff]
        %v1037 = vld [vmem:[%s4 + $0xb0] sm:$0xff]
        %v1038 = vld [vmem:[%s4 + $0xb8] sm:$0xff]
        %v1039 = vld [vmem:[%s4 + $0xc0] sm:$0xff]
        %v1040 = vld [vmem:[%s4 + $0xc8] sm:$0xff]
        %v1041 = vld [vmem:[%s4 + $0xd0] sm:$0xff]
        %v1042 = vld [vmem:[%s4 + $0xd8] sm:$0xff]
        %v1043 = vld [vmem:[%s4 + $0xe0] sm:$0xff]
        %v1044 = vld [vmem:[%s4 + $0xe8] sm:$0xff]
        %v1045 = vld [vmem:[%s4 + $0xf0] sm:$0xff]
        %v1046 = vld [vmem:[%s4 + $0xf8] sm:$0xff]
        %v1047 = vmul.f32 %v665, %v1015
        %v1048 = vmul.f32 %v688, %v1016
        %v1049 = vmul.f32 %v711, %v1017
        %v1050 = vmul.f32 %v734, %v1018
        %v1051 = vmul.f32 %v757, %v1019
        %v1052 = vmul.f32 %v780, %v1020
        %v1053 = vmul.f32 %v803, %v1021
        %v1054 = vmul.f32 %v826, %v1022
        %v1055 = vmul.f32 %v849, %v1023
        %v1056 = vmul.f32 %v872, %v1024
        %v1057 = vmul.f32 %v895, %v1025
        %v1058 = vmul.f32 %v918, %v1026
        %v1059 = vmul.f32 %v941, %v1027
        %v1060 = vmul.f32 %v964, %v1028
        %v1061 = vmul.f32 %v987, %v1029
        %v1062 = vmul.f32 %v1010, %v1030
        %v1063 = vmul.f32 %v668, %v1031
        %v1064 = vmul.f32 %v691, %v1032
        %v1065 = vmul.f32 %v714, %v1033
        %v1066 = vmul.f32 %v737, %v1034
        %v1067 = vmul.f32 %v760, %v1035
        %v1068 = vmul.f32 %v783, %v1036
        %v1069 = vmul.f32 %v806, %v1037
        %v1070 = vmul.f32 %v829, %v1038
        %v1071 = vmul.f32 %v852, %v1039
        %v1072 = vmul.f32 %v875, %v1040
        %v1073 = vmul.f32 %v898, %v1041
        %v1074 = vmul.f32 %v921, %v1042
        %v1075 = vmul.f32 %v944, %v1043
        %v1076 = vmul.f32 %v967, %v1044
        %v1077 = vmul.f32 %v990, %v1045
        %v1078 = vmul.f32 %v1013, %v1046
        %v1079 = vadd.f32 %v1047, %v1063
        %v1080 = vrot.slane %v1079, 4
        %v1081 = vadd.f32 %v1079, %v1080
        %v1082 = vrot.slane %v1081, 2
        %v1083 = vadd.f32 %v1081, %v1082
        %v1084 = vrot.slane %v1083, 1
        %v1085 = vadd.f32 %v1083, %v1084
        %v1086 = vadd.f32 %v1048, %v1064
        %v1087 = vrot.slane %v1086, 4
        %v1088 = vadd.f32 %v1086, %v1087
        %v1089 = vrot.slane %v1088, 2
        %v1090 = vadd.f32 %v1088, %v1089
        %v1091 = vrot.slane %v1090, 1
        %v1092 = vadd.f32 %v1090, %v1091
        %v1093 = vadd.f32 %v1049, %v1065
        %v1094 = vrot.slane %v1093, 4
        %v1095 = vadd.f32 %v1093, %v1094
        %v1096 = vrot.slane %v1095, 2
        %v1097 = vadd.f32 %v1095, %v1096
        %v1098 = vrot.slane %v1097, 1
        %v1099 = vadd.f32 %v1097, %v1098
        %v1100 = vadd.f32 %v1050, %v1066
        %v1101 = vrot.slane %v1100, 4
        %v1102 = vadd.f32 %v1100, %v1101
        %v1103 = vrot.slane %v1102, 2
        %v1104 = vadd.f32 %v1102, %v1103
        %v1105 = vrot.slane %v1104, 1
        %v1106 = vadd.f32 %v1104, %v1105
        %v1107 = vadd.f32 %v1051, %v1067
        %v1108 = vrot.slane %v1107, 4
        %v1109 = vadd.f32 %v1107, %v1108
        %v1110 = vrot.slane %v1109, 2
        %v1111 = vadd.f32 %v1109, %v1110
        %v1112 = vrot.slane %v1111, 1
        %v1113 = vadd.f32 %v1111, %v1112
        %v1114 = vadd.f32 %v1052, %v1068
        %v1115 = vrot.slane %v1114, 4
        %v1116 = vadd.f32 %v1114, %v1115
        %v1117 = vrot.slane %v1116, 2
        %v1118 = vadd.f32 %v1116, %v1117
        %v1119 = vrot.slane %v1118, 1
        %v1120 = vadd.f32 %v1118, %v1119
        %v1121 = vadd.f32 %v1053, %v1069
        %v1122 = vrot.slane %v1121, 4
        %v1123 = vadd.f32 %v1121, %v1122
        %v1124 = vrot.slane %v1123, 2
        %v1125 = vadd.f32 %v1123, %v1124
        %v1126 = vrot.slane %v1125, 1
        %v1127 = vadd.f32 %v1125, %v1126
        %v1128 = vadd.f32 %v1054, %v1070
        %v1129 = vrot.slane %v1128, 4
        %v1130 = vadd.f32 %v1128, %v1129
        %v1131 = vrot.slane %v1130, 2
        %v1132 = vadd.f32 %v1130, %v1131
        %v1133 = vrot.slane %v1132, 1
        %v1134 = vadd.f32 %v1132, %v1133
        %v1135 = vadd.f32 %v1055, %v1071
        %v1136 = vrot.slane %v1135, 4
        %v1137 = vadd.f32 %v1135, %v1136
        %v1138 = vrot.slane %v1137, 2
        %v1139 = vadd.f32 %v1137, %v1138
        %v1140 = vrot.slane %v1139, 1
        %v1141 = vadd.f32 %v1139, %v1140
        %v1142 = vadd.f32 %v1056, %v1072
        %v1143 = vrot.slane %v1142, 4
        %v1144 = vadd.f32 %v1142, %v1143
        %v1145 = vrot.slane %v1144, 2
        %v1146 = vadd.f32 %v1144, %v1145
        %v1147 = vrot.slane %v1146, 1
        %v1148 = vadd.f32 %v1146, %v1147
        %v1149 = vadd.f32 %v1057, %v1073
        %v1150 = vrot.slane %v1149, 4
        %v1151 = vadd.f32 %v1149, %v1150
        %v1152 = vrot.slane %v1151, 2
        %v1153 = vadd.f32 %v1151, %v1152
        %v1154 = vrot.slane %v1153, 1
        %v1155 = vadd.f32 %v1153, %v1154
        %v1156 = vadd.f32 %v1058, %v1074
        %v1157 = vrot.slane %v1156, 4
        %v1158 = vadd.f32 %v1156, %v1157
        %v1159 = vrot.slane %v1158, 2
        %v1160 = vadd.f32 %v1158, %v1159
        %v1161 = vrot.slane %v1160, 1
        %v1162 = vadd.f32 %v1160, %v1161
        %v1163 = vadd.f32 %v1059, %v1075
        %v1164 = vrot.slane %v1163, 4
        %v1165 = vadd.f32 %v1163, %v1164
        %v1166 = vrot.slane %v1165, 2
        %v1167 = vadd.f32 %v1165, %v1166
        %v1168 = vrot.slane %v1167, 1
        %v1169 = vadd.f32 %v1167, %v1168
        %v1170 = vadd.f32 %v1060, %v1076
        %v1171 = vrot.slane %v1170, 4
        %v1172 = vadd.f32 %v1170, %v1171
        %v1173 = vrot.slane %v1172, 2
        %v1174 = vadd.f32 %v1172, %v1173
        %v1175 = vrot.slane %v1174, 1
        %v1176 = vadd.f32 %v1174, %v1175
        %v1177 = vadd.f32 %v1061, %v1077
        %v1178 = vrot.slane %v1177, 4
        %v1179 = vadd.f32 %v1177, %v1178
        %v1180 = vrot.slane %v1179, 2
        %v1181 = vadd.f32 %v1179, %v1180
        %v1182 = vrot.slane %v1181, 1
        %v1183 = vadd.f32 %v1181, %v1182
        %v1184 = vadd.f32 %v1062, %v1078
        %v1185 = vrot.slane %v1184, 4
        %v1186 = vadd.f32 %v1184, %v1185
        %v1187 = vrot.slane %v1186, 2
        %v1188 = vadd.f32 %v1186, %v1187
        %v1189 = vrot.slane %v1188, 1
        %v1190 = vadd.f32 %v1188, %v1189
        %v1191 = vld [vmem:[%s5] sm:$0x1]
        %v1192 = vadd.f32 %v1191, %v1085
        %v1193 = vadd.f32 %v1192, %v1092
        %v1194 = vadd.f32 %v1193, %v1099
        %v1195 = vadd.f32 %v1194, %v1106
        %v1196 = vadd.f32 %v1195, %v1113
        %v1197 = vadd.f32 %v1196, %v1120
        %v1198 = vadd.f32 %v1197, %v1127
        %v1199 = vadd.f32 %v1198, %v1134
        %v1200 = vadd.f32 %v1199, %v1141
        %v1201 = vadd.f32 %v1200, %v1148
        %v1202 = vadd.f32 %v1201, %v1155
        %v1203 = vadd.f32 %v1202, %v1162
        %v1204 = vadd.f32 %v1203, %v1169
        %v1205 = vadd.f32 %v1204, %v1176
        %v1206 = vadd.f32 %v1205, %v1183
        %v1207 = vadd.f32 %v1206, %v1190
        %1208 = vst [vmem:[%s243] sm:$0x1] %v1207
        %s1209 = sand.u32 %s159, 1
        %s1210 = scalar_lea.sflag [#allocation3], %s1209
        %s1211 = sand.u32 %s159, 1
        %s1212 = scalar_lea.vmem [#allocation2], %s1211
        // Predicated region
        $region45: #{cnn_forward.3} parent=43 // pred_check
          %p1213 = pneg %p169
        $region46: #{cnn_forward.3} parent=43 // pred_check_branch
          %1215 = sbr.rel (%p1213) target = $region48
        $region47: #{cnn_forward.3} parent=43 // pred_region
          %1217 = vsyncadd %s1210, 0
          %s1218 = scalar_lea.hbm %s6, %s20
          %s1220 = sshll.u32 %s1212, 4
          %s1221 = int_to_ptr.vmem [resolvable:$true] %s1220
          %s1222 = sshll.u32 %s1218, 4
          %s1223 = int_to_ptr.hbm [resolvable:$true] %s1222
          %1225 = dma.vmem_to_hbm [thread:$0]  %s1221, 16, %s1223, %s1210
        $region48: #{cnn_forward.3} parent=43 // pred_fallthru
          _
      $region44: #{cnn_forward.3} parent=5 // pred_fallthru
        _
      %p1226 = scmp.le.s32.totalorder 2, %s15
      // Predicated region
      $region49: #{cnn_forward.3} parent=5 // pred_check
        %p1227 = pneg %p1226
      $region50: #{cnn_forward.3} parent=5 // pred_check_branch
        %1229 = sbr.rel (%p1227) target = $region52
      $region51: #{cnn_forward.3} parent=5 // pred_region
        %s1230 = ssub.s32 %s15, 2
        // Predicated region
        $region53: #{cnn_forward.3} parent=51 // pred_check
          %p1231 = pneg %p175
        $region54: #{cnn_forward.3} parent=51 // pred_check_branch
          %1233 = sbr.rel (%p1231) target = $region56
        $region55: #{cnn_forward.3} parent=51 // pred_region
          %s1234 = sand.u32 %s160, 1
          %s1235 = scalar_lea.sflag [#allocation3], %s1234
          %s1236 = sand.u32 %s160, 1
          %s1237 = scalar_lea.vmem [#allocation2], %s1236
          %1239 = dma.done %s1235, 16
        $region56: #{cnn_forward.3} parent=51 // pred_fallthru
          _
      $region52: #{cnn_forward.3} parent=5 // pred_fallthru
        _
    $region6: #{cnn_forward.3} parent=1 // loop_footer
      %s19 = sadd.s32 1, %s15
    $region7: #{cnn_forward.3} parent=1 // loop_footer_branch
      %14 = sbr.rel target = $region3
    $region8: #{cnn_forward.3} parent=1 // loop_exit
      _
    %1240 = vsyncpa [#allocation3], 1
    %s1241 = scalar_lea.sflag [#allocation3], 1
    %1242 = vsyncpa %s1241, 1

</llo_original>
